<compile_context>
chip_gen: v5e
topology: v5e:2x2
jax: 0.10.0
libtpu: 0.0.40
codegen_flags: <defaults>
</compile_context>

<pallas_src>
import math

import numpy as np
import jax
import jax.numpy as jnp
from jax.experimental import pallas as pl
from jax.experimental.pallas import tpu as pltpu


# ----------------------------------------------------------------------------
# Pallas kernels
# ----------------------------------------------------------------------------
def lstm_bidir_kernel(x_ref, wih_ref, whh_ref, b_ref, cfin_ref,
                      xz_buf, seq_buf, h_sc, c_sc):
    """Stacked LSTM over a padded sequence for one direction (grid axis = dir).

    x_ref:    [T, B, H]      time-major embedded inputs (this direction)
    wih_ref:  [L, H, 4H]     input->gates weights (torch weight_ih, transposed)
    whh_ref:  [L, H, 4H]     hidden->gates weights (torch weight_hh, transposed)
    b_ref:    [L, 1, 4H]     b_ih + b_hh
    cfin_ref: [L, B, H]      final cell state per layer
    xz_buf:   [T, B, 4H]     VMEM scratch: precomputed input projection
    seq_buf:  [T, B, H]      VMEM scratch: inter-layer hidden sequence
    """
    T, B, H = x_ref.shape
    L = wih_ref.shape[0]

    for l in range(L):                       # unrolled at trace time
        # ---- hoisted input projection: one big MXU matmul over T*B rows ----
        x_flat = (x_ref[...] if l == 0 else seq_buf[...]).reshape(T * B, H)
        wih = wih_ref[l]                     # [H, 4H]  static layer index
        whh = whh_ref[l]                     # [H, 4H]  hoisted out of time loop
        bias = b_ref[l]                      # [1, 4H]  folded once into xz
        xz_buf[...] = (
            jnp.dot(x_flat, wih, preferred_element_type=jnp.float32) + bias
        ).reshape(T, B, 4 * H)

        h_sc[...] = jnp.zeros_like(h_sc)
        c_sc[...] = jnp.zeros_like(c_sc)
        write_seq = l < L - 1                # last layer's sequence is dead

        def step(t, carry):
            # only the serial h @ W_hh matmul remains inside the loop
            z = xz_buf[t] + jnp.dot(h_sc[...], whh,
                                    preferred_element_type=jnp.float32)
            i = jax.nn.sigmoid(z[:, 0:H])
            f = jax.nn.sigmoid(z[:, H:2 * H])
            g = jnp.tanh(z[:, 2 * H:3 * H])
            o = jax.nn.sigmoid(z[:, 3 * H:4 * H])
            c_new = f * c_sc[...] + i * g
            h_new = o * jnp.tanh(c_new)
            c_sc[...] = c_new
            h_sc[...] = h_new
            if write_seq:
                seq_buf[t] = h_new
            return carry

        jax.lax.fori_loop(0, T, step, 0, unroll=True)
        cfin_ref[l] = c_sc[...]


def mlp_kernel(cp_ref, ch_ref, w1_ref, b1_ref, w2_ref, b2_ref, o_ref):
    """Fused concat + Linear(4H->H) -> ReLU -> Linear(H->C).

    cp_ref/ch_ref: [2, L, B, H]  final cell states for premise / hypothesis,
                                 index 0 = forward LSTM, 1 = backward LSTM.
    """
    L, B, H = cp_ref.shape[1], cp_ref.shape[2], cp_ref.shape[3]
    rows = L * B
    x = jnp.concatenate(
        [cp_ref[0].reshape(rows, H), cp_ref[1].reshape(rows, H),
         ch_ref[0].reshape(rows, H), ch_ref[1].reshape(rows, H)], axis=1)
    h = jnp.dot(x, w1_ref[...], preferred_element_type=jnp.float32) + b1_ref[...]
    h = jnp.maximum(h, 0.0)
    o_ref[...] = jnp.dot(h, w2_ref[...], preferred_element_type=jnp.float32) + b2_ref[...]


_VMEM = pl.BlockSpec(memory_space=pltpu.MemorySpace.VMEM)


def run_bidir_lstm(x, wih_all, whh_all, bias_all):
    """x: [2, T, B, H] (dir-stacked, time-major). Returns c_fin [2, L, B, H]."""
    D, T, B, H = x.shape
    L = wih_all.shape[1]
    grid_spec = pltpu.PrefetchScalarGridSpec(
        num_scalar_prefetch=0,
        grid=(D,),
        in_specs=[
            pl.BlockSpec((None, T, B, H), lambda d: (d, 0, 0, 0)),
            pl.BlockSpec((None, L, H, 4 * H), lambda d: (d, 0, 0, 0)),
            pl.BlockSpec((None, L, H, 4 * H), lambda d: (d, 0, 0, 0)),
            pl.BlockSpec((None, L, 1, 4 * H), lambda d: (d, 0, 0, 0)),
        ],
        out_specs=pl.BlockSpec((None, L, B, H), lambda d: (d, 0, 0, 0)),
        scratch_shapes=[
            pltpu.VMEM((T, B, 4 * H), jnp.float32),   # xz (input projection)
            pltpu.VMEM((T, B, H), jnp.float32),       # inter-layer sequence
            pltpu.VMEM((B, H), jnp.float32),          # h state
            pltpu.VMEM((B, H), jnp.float32),          # c state
        ],
    )
    return pl.pallas_call(
        lstm_bidir_kernel,
        out_shape=jax.ShapeDtypeStruct((D, L, B, H), jnp.float32),
        grid_spec=grid_spec,
        compiler_params=pltpu.CompilerParams(dimension_semantics=("parallel",)),
    )(x, wih_all, whh_all, bias_all)


def run_classifier(c_prem, c_hyp, w1_t, b1, w2_t, b2, num_classes):
    _, L, B, H = c_prem.shape
    out = pl.pallas_call(
        mlp_kernel,
        out_shape=jax.ShapeDtypeStruct((L * B, num_classes), jnp.float32),
        in_specs=[_VMEM] * 6,
        out_specs=_VMEM,
    )(c_prem, c_hyp, w1_t, b1, w2_t, b2)
    return out.reshape(L, B, num_classes)


# ----------------------------------------------------------------------------
# Glue: padding (fix_padding equivalent), embedding, parameter init
# ----------------------------------------------------------------------------
def fix_padding_np(batch_premises, batch_hypotheses):
    def pad(seqs):
        T = max(len(s) for s in seqs)
        out = np.zeros((len(seqs), T), dtype=np.int32)
        for i, s in enumerate(seqs):
            out[i, :len(s)] = np.asarray(s, dtype=np.int32)
        return out

    a = pad(batch_premises)
    b = pad(batch_hypotheses)
    a_rev = pad([list(reversed(s)) for s in batch_premises])
    b_rev = pad([list(reversed(s)) for s in batch_hypotheses])
    return a, b, a_rev, b_rev


def init_params(key, vocab_size, hidden_dim, num_layers, num_classes):
    H = hidden_dim
    stdv = 1.0 / math.sqrt(H)
    keys = iter(jax.random.split(key, 8 * 2 * num_layers + 8))

    def unif(shape):
        return jax.random.uniform(next(keys), shape, jnp.float32, -stdv, stdv)

    params = {"embedding": jax.random.normal(next(keys), (vocab_size, H), jnp.float32)}

    wih, whh, bias = [], [], []
    for _ in range(2):                       # dir 0 = lstm_forward, 1 = lstm_backward
        wih_l, whh_l, bias_l = [], [], []
        for _ in range(num_layers):
            w_ih = unif((4 * H, H))          # torch layout [4H, in]
            w_hh = unif((4 * H, H))
            b_ih = unif((4 * H,))
            b_hh = unif((4 * H,))
            wih_l.append(jnp.transpose(w_ih))                 # [H, 4H]
            whh_l.append(jnp.transpose(w_hh))                 # [H, 4H]
            bias_l.append((b_ih + b_hh).reshape(1, 4 * H))    # [1, 4H]
        wih.append(jnp.stack(wih_l))
        whh.append(jnp.stack(whh_l))
        bias.append(jnp.stack(bias_l))
    params["wih"] = jnp.stack(wih)           # [2, L, H, 4H]
    params["whh"] = jnp.stack(whh)           # [2, L, H, 4H]
    params["bias"] = jnp.stack(bias)         # [2, L, 1, 4H]

    w1 = unif((H, 4 * H))                    # torch Linear(4H -> H): [out, in]
    b1 = unif((H,))
    w2 = unif((num_classes, H))              # torch Linear(H -> C)
    b2 = unif((num_classes,))
    params["int_w_t"] = jnp.transpose(w1)    # [4H, H]
    params["int_b"] = b1.reshape(1, H)
    params["out_w_t"] = jnp.transpose(w2)    # [H, C]
    params["out_b"] = b2.reshape(1, num_classes)
    params["num_classes"] = num_classes
    return params


def shallow_bilstm_forward(params, a_lists, b_lists):
    a, b, a_rev, b_rev = fix_padding_np(a_lists, b_lists)
    B_real = a.shape[0]
    B_pad = ((B_real + 7) // 8) * 8          # sublane-dense batch

    def pad_batch(tok):
        if tok.shape[0] < B_pad:
            tok = np.pad(tok, ((0, B_pad - tok.shape[0]), (0, 0)))
        return tok

    a, b, a_rev, b_rev = map(pad_batch, (a, b, a_rev, b_rev))
    emb = params["embedding"]

    def embed_tm(tok):                       # [B, T] int32 -> [T, B, H] (time-major)
        return jnp.take(emb, jnp.asarray(tok.T), axis=0)

    # dir-stacked inputs: index 0 = forward-order tokens, 1 = reversed tokens
    x_prem = jnp.stack([embed_tm(a), embed_tm(a_rev)], axis=0)   # [2, Ta, B, H]
    x_hyp = jnp.stack([embed_tm(b), embed_tm(b_rev)], axis=0)    # [2, Tb, B, H]

    # premise and hypothesis keep separate calls: their padded lengths differ,
    # and running extra padding steps would change the final cell state.
    c_prem = run_bidir_lstm(x_prem, params["wih"], params["whh"], params["bias"])
    c_hyp = run_bidir_lstm(x_hyp, params["wih"], params["whh"], params["bias"])

    out = run_classifier(c_prem, c_hyp, params["int_w_t"], params["int_b"],
                         params["out_w_t"], params["out_b"],
                         params["num_classes"])                  # [L, B_pad, C]
    out = out[:, :B_real, :]
    return jnp.squeeze(out)                                      # torch.squeeze


# ----------------------------------------------------------------------------
# Pure-JAX reference (for a numerical sanity check of the kernels)
# ----------------------------------------------------------------------------
def _reference_forward(params, a_lists, b_lists):
    a, b, a_rev, b_rev = fix_padding_np(a_lists, b_lists)
    emb = params["embedding"]
    H = emb.shape[1]
    L = params["wih"].shape[1]

    def lstm_dir(tokens, d):
        x = jnp.take(emb, jnp.asarray(tokens), axis=0)            # [B, T, H]
        B = x.shape[0]
        inp = x
        c_fins = []
        for l in range(L):
            wih = params["wih"][d, l]
            whh = params["whh"][d, l]
            bias = params["bias"][d, l][0]

            def step(carry, x_t):
                h, c = carry
                z = x_t @ wih + h @ whh + bias
                i = jax.nn.sigmoid(z[:, :H])
                f = jax.nn.sigmoid(z[:, H:2 * H])
                g = jnp.tanh(z[:, 2 * H:3 * H])
                o = jax.nn.sigmoid(z[:, 3 * H:])
                c = f * c + i * g
                h = o * jnp.tanh(c)
                return (h, c), h

            (h, c), hs = jax.lax.scan(
                step, (jnp.zeros((B, H)), jnp.zeros((B, H))),
                jnp.transpose(inp, (1, 0, 2)))
            inp = jnp.transpose(hs, (1, 0, 2))
            c_fins.append(c)
        return jnp.stack(c_fins)                                  # [L, B, H]

    c_a, c_b = lstm_dir(a, 0), lstm_dir(b, 0)
    c_a_rev, c_b_rev = lstm_dir(a_rev, 1), lstm_dir(b_rev, 1)
    c = jnp.concatenate([c_a, c_a_rev, c_b, c_b_rev], axis=2)     # [L, B, 4H]
    h = jnp.maximum(jnp.einsum("lbf,fh->lbh", c, params["int_w_t"])
                    + params["int_b"][0], 0.0)
    out = jnp.einsum("lbh,hc->lbc", h, params["out_w_t"]) + params["out_b"][0]
    return jnp.squeeze(out)


# ----------------------------------------------------------------------------
if __name__ == "__main__":
    vocab_size = 50
    hidden_dim = 32
    num_layers = 1
    num_classes = 3

    key = jax.random.PRNGKey(0)
    params = init_params(key, vocab_size, hidden_dim, num_layers, num_classes)

    # batch of 2 ragged premises / hypotheses (token ids), as the torch module expects
    a_lists = [[1, 2, 3, 4, 5],
               [6, 7, 8, 9, 10, 11, 12, 13]]
    b_lists = [[14, 15, 16, 17, 18, 19],
               [20, 21, 22, 23]]

    out = shallow_bilstm_forward(params, a_lists, b_lists)
    out = jax.block_until_ready(out)
    assert out.shape == (2, num_classes), out.shape
    assert jnp.all(jnp.isfinite(out))

    ref = jax.block_until_ready(_reference_forward(params, a_lists, b_lists))
    np.testing.assert_allclose(np.asarray(out), np.asarray(ref), rtol=1e-4, atol=1e-4)

    print("KERNEL_OK")
</pallas_src>

<mosaic_0001>
module attributes {stable_mosaic.version = 11 : i64} {
  func.func @lstm_bidir_kernel(%arg0: i32, %arg1: memref<1x8x8x32xf32, #tpu.memory_space<vmem>>, %arg2: memref<1x1x32x128xf32, #tpu.memory_space<vmem>>, %arg3: memref<1x1x32x128xf32, #tpu.memory_space<vmem>>, %arg4: memref<1x1x1x128xf32, #tpu.memory_space<vmem>>, %arg5: memref<1x1x8x32xf32, #tpu.memory_space<vmem>>, %arg6: memref<8x8x128xf32, #tpu.memory_space<vmem>>, %arg7: memref<8x8x32xf32, #tpu.memory_space<vmem>>, %arg8: memref<8x32xf32, #tpu.memory_space<vmem>>, %arg9: memref<8x32xf32, #tpu.memory_space<vmem>>) attributes {dimension_semantics = [#tpu.dimension_semantics<parallel>], iteration_bounds = array<i64: 2>, scalar_prefetch = 0 : i64, scratch_operands = 4 : i64, tpu.core_type = #tpu.core_type<tc>, window_params = [{transform_indices = @transform_0, window_bounds = array<i64: 1, 8, 8, 32>}, {transform_indices = @transform_1, window_bounds = array<i64: 1, 1, 32, 128>}, {transform_indices = @transform_2, window_bounds = array<i64: 1, 1, 32, 128>}, {transform_indices = @transform_3, window_bounds = array<i64: 1, 1, 1, 128>}, {transform_indices = @transform_4, window_bounds = array<i64: 1, 1, 8, 32>}]} {
    %c0 = arith.constant 0 : index
    %c0_0 = arith.constant 0 : index
    %c0_1 = arith.constant 0 : index
    %c0_2 = arith.constant 0 : index
    %0 = vector.load %arg1[%c0, %c0_0, %c0_1, %c0_2] : memref<1x8x8x32xf32, #tpu.memory_space<vmem>>, vector<1x8x8x32xf32>
    %1 = vector.shape_cast %0 : vector<1x8x8x32xf32> to vector<8x8x32xf32>
    %2 = vector.shape_cast %1 : vector<8x8x32xf32> to vector<64x32xf32>
    %c0_3 = arith.constant 0 : index
    %c0_4 = arith.constant 0 : index
    %c0_5 = arith.constant 0 : index
    %c0_6 = arith.constant 0 : index
    %3 = vector.load %arg2[%c0_3, %c0_4, %c0_5, %c0_6] : memref<1x1x32x128xf32, #tpu.memory_space<vmem>>, vector<1x1x32x128xf32>
    %4 = vector.shape_cast %3 : vector<1x1x32x128xf32> to vector<32x128xf32>
    %c0_7 = arith.constant 0 : index
    %c0_8 = arith.constant 0 : index
    %c0_9 = arith.constant 0 : index
    %c0_10 = arith.constant 0 : index
    %5 = vector.load %arg3[%c0_7, %c0_8, %c0_9, %c0_10] : memref<1x1x32x128xf32, #tpu.memory_space<vmem>>, vector<1x1x32x128xf32>
    %6 = vector.shape_cast %5 : vector<1x1x32x128xf32> to vector<32x128xf32>
    %c0_11 = arith.constant 0 : index
    %c0_12 = arith.constant 0 : index
    %c0_13 = arith.constant 0 : index
    %c0_14 = arith.constant 0 : index
    %7 = vector.load %arg4[%c0_11, %c0_12, %c0_13, %c0_14] : memref<1x1x1x128xf32, #tpu.memory_space<vmem>>, vector<1x1x1x128xf32>
    %8 = vector.shape_cast %7 : vector<1x1x1x128xf32> to vector<1x128xf32>
    %cst = arith.constant dense<0.000000e+00> : vector<64x128xf32>
    %9 = tpu.matmul %2, %4, %cst {dimension_numbers = #tpu.dot_dimension_numbers<[1], [0], [0], [1], [0, 0, 1, 1], [], []>} : vector<64x32xf32>, vector<32x128xf32>, vector<64x128xf32> -> vector<64x128xf32>
    %10 = vector.broadcast %8 : vector<1x128xf32> to vector<64x128xf32>
    %11 = arith.addf %9, %10 : vector<64x128xf32>
    %12 = vector.shape_cast %11 : vector<64x128xf32> to vector<8x8x128xf32>
    %c0_15 = arith.constant 0 : index
    %c0_16 = arith.constant 0 : index
    %c0_17 = arith.constant 0 : index
    %13 = vector.load %arg6[%c0_15, %c0_16, %c0_17] : memref<8x8x128xf32, #tpu.memory_space<vmem>>, vector<8x8x128xf32>
    tpu.vector_store %arg6[%c0_15, %c0_16, %c0_17], %12 {strides = array<i32>} : memref<8x8x128xf32, #tpu.memory_space<vmem>>, vector<8x8x128xf32>,
    %cst_18 = arith.constant 0.000000e+00 : f32
    %14 = vector.broadcast %cst_18 : f32 to vector<8x32xf32>
    %c0_19 = arith.constant 0 : index
    %c0_20 = arith.constant 0 : index
    %15 = vector.load %arg8[%c0_19, %c0_20] : memref<8x32xf32, #tpu.memory_space<vmem>>, vector<8x32xf32>
    tpu.vector_store %arg8[%c0_19, %c0_20], %14 {strides = array<i32>} : memref<8x32xf32, #tpu.memory_space<vmem>>, vector<8x32xf32>,
    %cst_21 = arith.constant 0.000000e+00 : f32
    %16 = vector.broadcast %cst_21 : f32 to vector<8x32xf32>
    %c0_22 = arith.constant 0 : index
    %c0_23 = arith.constant 0 : index
    %17 = vector.load %arg9[%c0_22, %c0_23] : memref<8x32xf32, #tpu.memory_space<vmem>>, vector<8x32xf32>
    tpu.vector_store %arg9[%c0_22, %c0_23], %16 {strides = array<i32>} : memref<8x32xf32, #tpu.memory_space<vmem>>, vector<8x32xf32>,
    %c0_i32 = arith.constant 0 : i32
    %18 = arith.index_cast %c0_i32 : i32 to index
    %c0_24 = arith.constant 0 : index
    %c0_25 = arith.constant 0 : index
    %19 = vector.load %arg6[%18, %c0_24, %c0_25] : memref<8x8x128xf32, #tpu.memory_space<vmem>>, vector<1x8x128xf32>
    %20 = vector.shape_cast %19 : vector<1x8x128xf32> to vector<8x128xf32>
    %c0_26 = arith.constant 0 : index
    %c0_27 = arith.constant 0 : index
    %21 = vector.load %arg8[%c0_26, %c0_27] : memref<8x32xf32, #tpu.memory_space<vmem>>, vector<8x32xf32>
    %cst_28 = arith.constant dense<0.000000e+00> : vector<8x128xf32>
    %22 = tpu.matmul %21, %6, %cst_28 {dimension_numbers = #tpu.dot_dimension_numbers<[1], [0], [0], [1], [0, 0, 1, 1], [], []>} : vector<8x32xf32>, vector<32x128xf32>, vector<8x128xf32> -> vector<8x128xf32>
    %23 = arith.addf %20, %22 : vector<8x128xf32>
    %24 = vector.extract_strided_slice %23 {offsets = [0, 0], sizes = [8, 32], strides = [1, 1]} : vector<8x128xf32> to vector<8x32xf32>
    %25 = arith.negf %24 : vector<8x32xf32>
    %26 = math.exp %25 : vector<8x32xf32>
    %cst_29 = arith.constant 1.000000e+00 : f32
    %27 = vector.broadcast %cst_29 : f32 to vector<8x32xf32>
    %28 = arith.addf %27, %26 : vector<8x32xf32>
    %29 = arith.divf %27, %28 : vector<8x32xf32>
    %30 = vector.extract_strided_slice %23 {offsets = [0, 32], sizes = [8, 32], strides = [1, 1]} : vector<8x128xf32> to vector<8x32xf32>
    %31 = arith.negf %30 : vector<8x32xf32>
    %32 = math.exp %31 : vector<8x32xf32>
    %cst_30 = arith.constant 1.000000e+00 : f32
    %33 = vector.broadcast %cst_30 : f32 to vector<8x32xf32>
    %34 = arith.addf %33, %32 : vector<8x32xf32>
    %35 = arith.divf %33, %34 : vector<8x32xf32>
    %36 = vector.extract_strided_slice %23 {offsets = [0, 64], sizes = [8, 32], strides = [1, 1]} : vector<8x128xf32> to vector<8x32xf32>
    %37 = math.tanh %36 : vector<8x32xf32>
    %38 = vector.extract_strided_slice %23 {offsets = [0, 96], sizes = [8, 32], strides = [1, 1]} : vector<8x128xf32> to vector<8x32xf32>
    %39 = arith.negf %38 : vector<8x32xf32>
    %40 = math.exp %39 : vector<8x32xf32>
    %cst_31 = arith.constant 1.000000e+00 : f32
    %41 = vector.broadcast %cst_31 : f32 to vector<8x32xf32>
    %42 = arith.addf %41, %40 : vector<8x32xf32>
    %43 = arith.divf %41, %42 : vector<8x32xf32>
    %c0_32 = arith.constant 0 : index
    %c0_33 = arith.constant 0 : index
    %44 = vector.load %arg9[%c0_32, %c0_33] : memref<8x32xf32, #tpu.memory_space<vmem>>, vector<8x32xf32>
    %45 = arith.mulf %35, %44 : vector<8x32xf32>
    %46 = arith.mulf %29, %37 : vector<8x32xf32>
    %47 = arith.addf %45, %46 : vector<8x32xf32>
    %48 = math.tanh %47 : vector<8x32xf32>
    %49 = arith.mulf %43, %48 : vector<8x32xf32>
    %c0_34 = arith.constant 0 : index
    %c0_35 = arith.constant 0 : index
    %50 = vector.load %arg9[%c0_34, %c0_35] : memref<8x32xf32, #tpu.memory_space<vmem>>, vector<8x32xf32>
    tpu.vector_store %arg9[%c0_34, %c0_35], %47 {strides = array<i32>} : memref<8x32xf32, #tpu.memory_space<vmem>>, vector<8x32xf32>,
    %c0_36 = arith.constant 0 : index
    %c0_37 = arith.constant 0 : index
    %51 = vector.load %arg8[%c0_36, %c0_37] : memref<8x32xf32, #tpu.memory_space<vmem>>, vector<8x32xf32>
    tpu.vector_store %arg8[%c0_36, %c0_37], %49 {strides = array<i32>} : memref<8x32xf32, #tpu.memory_space<vmem>>, vector<8x32xf32>,
    %c1_i32 = arith.constant 1 : i32
    %52 = arith.index_cast %c1_i32 : i32 to index
    %c0_38 = arith.constant 0 : index
    %c0_39 = arith.constant 0 : index
    %53 = vector.load %arg6[%52, %c0_38, %c0_39] : memref<8x8x128xf32, #tpu.memory_space<vmem>>, vector<1x8x128xf32>
    %54 = vector.shape_cast %53 : vector<1x8x128xf32> to vector<8x128xf32>
    %c0_40 = arith.constant 0 : index
    %c0_41 = arith.constant 0 : index
    %55 = vector.load %arg8[%c0_40, %c0_41] : memref<8x32xf32, #tpu.memory_space<vmem>>, vector<8x32xf32>
    %cst_42 = arith.constant dense<0.000000e+00> : vector<8x128xf32>
    %56 = tpu.matmul %55, %6, %cst_42 {dimension_numbers = #tpu.dot_dimension_numbers<[1], [0], [0], [1], [0, 0, 1, 1], [], []>} : vector<8x32xf32>, vector<32x128xf32>, vector<8x128xf32> -> vector<8x128xf32>
    %57 = arith.addf %54, %56 : vector<8x128xf32>
    %58 = vector.extract_strided_slice %57 {offsets = [0, 0], sizes = [8, 32], strides = [1, 1]} : vector<8x128xf32> to vector<8x32xf32>
    %59 = arith.negf %58 : vector<8x32xf32>
    %60 = math.exp %59 : vector<8x32xf32>
    %cst_43 = arith.constant 1.000000e+00 : f32
    %61 = vector.broadcast %cst_43 : f32 to vector<8x32xf32>
    %62 = arith.addf %61, %60 : vector<8x32xf32>
    %63 = arith.divf %61, %62 : vector<8x32xf32>
    %64 = vector.extract_strided_slice %57 {offsets = [0, 32], sizes = [8, 32], strides = [1, 1]} : vector<8x128xf32> to vector<8x32xf32>
    %65 = arith.negf %64 : vector<8x32xf32>
    %66 = math.exp %65 : vector<8x32xf32>
    %cst_44 = arith.constant 1.000000e+00 : f32
    %67 = vector.broadcast %cst_44 : f32 to vector<8x32xf32>
    %68 = arith.addf %67, %66 : vector<8x32xf32>
    %69 = arith.divf %67, %68 : vector<8x32xf32>
    %70 = vector.extract_strided_slice %57 {offsets = [0, 64], sizes = [8, 32], strides = [1, 1]} : vector<8x128xf32> to vector<8x32xf32>
    %71 = math.tanh %70 : vector<8x32xf32>
    %72 = vector.extract_strided_slice %57 {offsets = [0, 96], sizes = [8, 32], strides = [1, 1]} : vector<8x128xf32> to vector<8x32xf32>
    %73 = arith.negf %72 : vector<8x32xf32>
    %74 = math.exp %73 : vector<8x32xf32>
    %cst_45 = arith.constant 1.000000e+00 : f32
    %75 = vector.broadcast %cst_45 : f32 to vector<8x32xf32>
    %76 = arith.addf %75, %74 : vector<8x32xf32>
    %77 = arith.divf %75, %76 : vector<8x32xf32>
    %c0_46 = arith.constant 0 : index
    %c0_47 = arith.constant 0 : index
    %78 = vector.load %arg9[%c0_46, %c0_47] : memref<8x32xf32, #tpu.memory_space<vmem>>, vector<8x32xf32>
    %79 = arith.mulf %69, %78 : vector<8x32xf32>
    %80 = arith.mulf %63, %71 : vector<8x32xf32>
    %81 = arith.addf %79, %80 : vector<8x32xf32>
    %82 = math.tanh %81 : vector<8x32xf32>
    %83 = arith.mulf %77, %82 : vector<8x32xf32>
    %c0_48 = arith.constant 0 : index
    %c0_49 = arith.constant 0 : index
    %84 = vector.load %arg9[%c0_48, %c0_49] : memref<8x32xf32, #tpu.memory_space<vmem>>, vector<8x32xf32>
    tpu.vector_store %arg9[%c0_48, %c0_49], %81 {strides = array<i32>} : memref<8x32xf32, #tpu.memory_space<vmem>>, vector<8x32xf32>,
    %c0_50 = arith.constant 0 : index
    %c0_51 = arith.constant 0 : index
    %85 = vector.load %arg8[%c0_50, %c0_51] : memref<8x32xf32, #tpu.memory_space<vmem>>, vector<8x32xf32>
    tpu.vector_store %arg8[%c0_50, %c0_51], %83 {strides = array<i32>} : memref<8x32xf32, #tpu.memory_space<vmem>>, vector<8x32xf32>,
    %c2_i32 = arith.constant 2 : i32
    %86 = arith.index_cast %c2_i32 : i32 to index
    %c0_52 = arith.constant 0 : index
    %c0_53 = arith.constant 0 : index
    %87 = vector.load %arg6[%86, %c0_52, %c0_53] : memref<8x8x128xf32, #tpu.memory_space<vmem>>, vector<1x8x128xf32>
    %88 = vector.shape_cast %87 : vector<1x8x128xf32> to vector<8x128xf32>
    %c0_54 = arith.constant 0 : index
    %c0_55 = arith.constant 0 : index
    %89 = vector.load %arg8[%c0_54, %c0_55] : memref<8x32xf32, #tpu.memory_space<vmem>>, vector<8x32xf32>
    %cst_56 = arith.constant dense<0.000000e+00> : vector<8x128xf32>
    %90 = tpu.matmul %89, %6, %cst_56 {dimension_numbers = #tpu.dot_dimension_numbers<[1], [0], [0], [1], [0, 0, 1, 1], [], []>} : vector<8x32xf32>, vector<32x128xf32>, vector<8x128xf32> -> vector<8x128xf32>
    %91 = arith.addf %88, %90 : vector<8x128xf32>
    %92 = vector.extract_strided_slice %91 {offsets = [0, 0], sizes = [8, 32], strides = [1, 1]} : vector<8x128xf32> to vector<8x32xf32>
    %93 = arith.negf %92 : vector<8x32xf32>
    %94 = math.exp %93 : vector<8x32xf32>
    %cst_57 = arith.constant 1.000000e+00 : f32
    %95 = vector.broadcast %cst_57 : f32 to vector<8x32xf32>
    %96 = arith.addf %95, %94 : vector<8x32xf32>
    %97 = arith.divf %95, %96 : vector<8x32xf32>
    %98 = vector.extract_strided_slice %91 {offsets = [0, 32], sizes = [8, 32], strides = [1, 1]} : vector<8x128xf32> to vector<8x32xf32>
    %99 = arith.negf %98 : vector<8x32xf32>
    %100 = math.exp %99 : vector<8x32xf32>
    %cst_58 = arith.constant 1.000000e+00 : f32
    %101 = vector.broadcast %cst_58 : f32 to vector<8x32xf32>
    %102 = arith.addf %101, %100 : vector<8x32xf32>
    %103 = arith.divf %101, %102 : vector<8x32xf32>
    %104 = vector.extract_strided_slice %91 {offsets = [0, 64], sizes = [8, 32], strides = [1, 1]} : vector<8x128xf32> to vector<8x32xf32>
    %105 = math.tanh %104 : vector<8x32xf32>
    %106 = vector.extract_strided_slice %91 {offsets = [0, 96], sizes = [8, 32], strides = [1, 1]} : vector<8x128xf32> to vector<8x32xf32>
    %107 = arith.negf %106 : vector<8x32xf32>
    %108 = math.exp %107 : vector<8x32xf32>
    %cst_59 = arith.constant 1.000000e+00 : f32
    %109 = vector.broadcast %cst_59 : f32 to vector<8x32xf32>
    %110 = arith.addf %109, %108 : vector<8x32xf32>
    %111 = arith.divf %109, %110 : vector<8x32xf32>
    %c0_60 = arith.constant 0 : index
    %c0_61 = arith.constant 0 : index
    %112 = vector.load %arg9[%c0_60, %c0_61] : memref<8x32xf32, #tpu.memory_space<vmem>>, vector<8x32xf32>
    %113 = arith.mulf %103, %112 : vector<8x32xf32>
    %114 = arith.mulf %97, %105 : vector<8x32xf32>
    %115 = arith.addf %113, %114 : vector<8x32xf32>
    %116 = math.tanh %115 : vector<8x32xf32>
    %117 = arith.mulf %111, %116 : vector<8x32xf32>
    %c0_62 = arith.constant 0 : index
    %c0_63 = arith.constant 0 : index
    %118 = vector.load %arg9[%c0_62, %c0_63] : memref<8x32xf32, #tpu.memory_space<vmem>>, vector<8x32xf32>
    tpu.vector_store %arg9[%c0_62, %c0_63], %115 {strides = array<i32>} : memref<8x32xf32, #tpu.memory_space<vmem>>, vector<8x32xf32>,
    %c0_64 = arith.constant 0 : index
    %c0_65 = arith.constant 0 : index
    %119 = vector.load %arg8[%c0_64, %c0_65] : memref<8x32xf32, #tpu.memory_space<vmem>>, vector<8x32xf32>
    tpu.vector_store %arg8[%c0_64, %c0_65], %117 {strides = array<i32>} : memref<8x32xf32, #tpu.memory_space<vmem>>, vector<8x32xf32>,
    %c3_i32 = arith.constant 3 : i32
    %120 = arith.index_cast %c3_i32 : i32 to index
    %c0_66 = arith.constant 0 : index
    %c0_67 = arith.constant 0 : index
    %121 = vector.load %arg6[%120, %c0_66, %c0_67] : memref<8x8x128xf32, #tpu.memory_space<vmem>>, vector<1x8x128xf32>
    %122 = vector.shape_cast %121 : vector<1x8x128xf32> to vector<8x128xf32>
    %c0_68 = arith.constant 0 : index
    %c0_69 = arith.constant 0 : index
    %123 = vector.load %arg8[%c0_68, %c0_69] : memref<8x32xf32, #tpu.memory_space<vmem>>, vector<8x32xf32>
    %cst_70 = arith.constant dense<0.000000e+00> : vector<8x128xf32>
    %124 = tpu.matmul %123, %6, %cst_70 {dimension_numbers = #tpu.dot_dimension_numbers<[1], [0], [0], [1], [0, 0, 1, 1], [], []>} : vector<8x32xf32>, vector<32x128xf32>, vector<8x128xf32> -> vector<8x128xf32>
    %125 = arith.addf %122, %124 : vector<8x128xf32>
    %126 = vector.extract_strided_slice %125 {offsets = [0, 0], sizes = [8, 32], strides = [1, 1]} : vector<8x128xf32> to vector<8x32xf32>
    %127 = arith.negf %126 : vector<8x32xf32>
    %128 = math.exp %127 : vector<8x32xf32>
    %cst_71 = arith.constant 1.000000e+00 : f32
    %129 = vector.broadcast %cst_71 : f32 to vector<8x32xf32>
    %130 = arith.addf %129, %128 : vector<8x32xf32>
    %131 = arith.divf %129, %130 : vector<8x32xf32>
    %132 = vector.extract_strided_slice %125 {offsets = [0, 32], sizes = [8, 32], strides = [1, 1]} : vector<8x128xf32> to vector<8x32xf32>
    %133 = arith.negf %132 : vector<8x32xf32>
    %134 = math.exp %133 : vector<8x32xf32>
    %cst_72 = arith.constant 1.000000e+00 : f32
    %135 = vector.broadcast %cst_72 : f32 to vector<8x32xf32>
    %136 = arith.addf %135, %134 : vector<8x32xf32>
    %137 = arith.divf %135, %136 : vector<8x32xf32>
    %138 = vector.extract_strided_slice %125 {offsets = [0, 64], sizes = [8, 32], strides = [1, 1]} : vector<8x128xf32> to vector<8x32xf32>
    %139 = math.tanh %138 : vector<8x32xf32>
    %140 = vector.extract_strided_slice %125 {offsets = [0, 96], sizes = [8, 32], strides = [1, 1]} : vector<8x128xf32> to vector<8x32xf32>
    %141 = arith.negf %140 : vector<8x32xf32>
    %142 = math.exp %141 : vector<8x32xf32>
    %cst_73 = arith.constant 1.000000e+00 : f32
    %143 = vector.broadcast %cst_73 : f32 to vector<8x32xf32>
    %144 = arith.addf %143, %142 : vector<8x32xf32>
    %145 = arith.divf %143, %144 : vector<8x32xf32>
    %c0_74 = arith.constant 0 : index
    %c0_75 = arith.constant 0 : index
    %146 = vector.load %arg9[%c0_74, %c0_75] : memref<8x32xf32, #tpu.memory_space<vmem>>, vector<8x32xf32>
    %147 = arith.mulf %137, %146 : vector<8x32xf32>
    %148 = arith.mulf %131, %139 : vector<8x32xf32>
    %149 = arith.addf %147, %148 : vector<8x32xf32>
    %150 = math.tanh %149 : vector<8x32xf32>
    %151 = arith.mulf %145, %150 : vector<8x32xf32>
    %c0_76 = arith.constant 0 : index
    %c0_77 = arith.constant 0 : index
    %152 = vector.load %arg9[%c0_76, %c0_77] : memref<8x32xf32, #tpu.memory_space<vmem>>, vector<8x32xf32>
    tpu.vector_store %arg9[%c0_76, %c0_77], %149 {strides = array<i32>} : memref<8x32xf32, #tpu.memory_space<vmem>>, vector<8x32xf32>,
    %c0_78 = arith.constant 0 : index
    %c0_79 = arith.constant 0 : index
    %153 = vector.load %arg8[%c0_78, %c0_79] : memref<8x32xf32, #tpu.memory_space<vmem>>, vector<8x32xf32>
    tpu.vector_store %arg8[%c0_78, %c0_79], %151 {strides = array<i32>} : memref<8x32xf32, #tpu.memory_space<vmem>>, vector<8x32xf32>,
    %c4_i32 = arith.constant 4 : i32
    %154 = arith.index_cast %c4_i32 : i32 to index
    %c0_80 = arith.constant 0 : index
    %c0_81 = arith.constant 0 : index
    %155 = vector.load %arg6[%154, %c0_80, %c0_81] : memref<8x8x128xf32, #tpu.memory_space<vmem>>, vector<1x8x128xf32>
    %156 = vector.shape_cast %155 : vector<1x8x128xf32> to vector<8x128xf32>
    %c0_82 = arith.constant 0 : index
    %c0_83 = arith.constant 0 : index
    %157 = vector.load %arg8[%c0_82, %c0_83] : memref<8x32xf32, #tpu.memory_space<vmem>>, vector<8x32xf32>
    %cst_84 = arith.constant dense<0.000000e+00> : vector<8x128xf32>
    %158 = tpu.matmul %157, %6, %cst_84 {dimension_numbers = #tpu.dot_dimension_numbers<[1], [0], [0], [1], [0, 0, 1, 1], [], []>} : vector<8x32xf32>, vector<32x128xf32>, vector<8x128xf32> -> vector<8x128xf32>
    %159 = arith.addf %156, %158 : vector<8x128xf32>
    %160 = vector.extract_strided_slice %159 {offsets = [0, 0], sizes = [8, 32], strides = [1, 1]} : vector<8x128xf32> to vector<8x32xf32>
    %161 = arith.negf %160 : vector<8x32xf32>
    %162 = math.exp %161 : vector<8x32xf32>
    %cst_85 = arith.constant 1.000000e+00 : f32
    %163 = vector.broadcast %cst_85 : f32 to vector<8x32xf32>
    %164 = arith.addf %163, %162 : vector<8x32xf32>
    %165 = arith.divf %163, %164 : vector<8x32xf32>
    %166 = vector.extract_strided_slice %159 {offsets = [0, 32], sizes = [8, 32], strides = [1, 1]} : vector<8x128xf32> to vector<8x32xf32>
    %167 = arith.negf %166 : vector<8x32xf32>
    %168 = math.exp %167 : vector<8x32xf32>
    %cst_86 = arith.constant 1.000000e+00 : f32
    %169 = vector.broadcast %cst_86 : f32 to vector<8x32xf32>
    %170 = arith.addf %169, %168 : vector<8x32xf32>
    %171 = arith.divf %169, %170 : vector<8x32xf32>
    %172 = vector.extract_strided_slice %159 {offsets = [0, 64], sizes = [8, 32], strides = [1, 1]} : vector<8x128xf32> to vector<8x32xf32>
    %173 = math.tanh %172 : vector<8x32xf32>
    %174 = vector.extract_strided_slice %159 {offsets = [0, 96], sizes = [8, 32], strides = [1, 1]} : vector<8x128xf32> to vector<8x32xf32>
    %175 = arith.negf %174 : vector<8x32xf32>
    %176 = math.exp %175 : vector<8x32xf32>
    %cst_87 = arith.constant 1.000000e+00 : f32
    %177 = vector.broadcast %cst_87 : f32 to vector<8x32xf32>
    %178 = arith.addf %177, %176 : vector<8x32xf32>
    %179 = arith.divf %177, %178 : vector<8x32xf32>
    %c0_88 = arith.constant 0 : index
    %c0_89 = arith.constant 0 : index
    %180 = vector.load %arg9[%c0_88, %c0_89] : memref<8x32xf32, #tpu.memory_space<vmem>>, vector<8x32xf32>
    %181 = arith.mulf %171, %180 : vector<8x32xf32>
    %182 = arith.mulf %165, %173 : vector<8x32xf32>
    %183 = arith.addf %181, %182 : vector<8x32xf32>
    %184 = math.tanh %183 : vector<8x32xf32>
    %185 = arith.mulf %179, %184 : vector<8x32xf32>
    %c0_90 = arith.constant 0 : index
    %c0_91 = arith.constant 0 : index
    %186 = vector.load %arg9[%c0_90, %c0_91] : memref<8x32xf32, #tpu.memory_space<vmem>>, vector<8x32xf32>
    tpu.vector_store %arg9[%c0_90, %c0_91], %183 {strides = array<i32>} : memref<8x32xf32, #tpu.memory_space<vmem>>, vector<8x32xf32>,
    %c0_92 = arith.constant 0 : index
    %c0_93 = arith.constant 0 : index
    %187 = vector.load %arg8[%c0_92, %c0_93] : memref<8x32xf32, #tpu.memory_space<vmem>>, vector<8x32xf32>
    tpu.vector_store %arg8[%c0_92, %c0_93], %185 {strides = array<i32>} : memref<8x32xf32, #tpu.memory_space<vmem>>, vector<8x32xf32>,
    %c5_i32 = arith.constant 5 : i32
    %188 = arith.index_cast %c5_i32 : i32 to index
    %c0_94 = arith.constant 0 : index
    %c0_95 = arith.constant 0 : index
    %189 = vector.load %arg6[%188, %c0_94, %c0_95] : memref<8x8x128xf32, #tpu.memory_space<vmem>>, vector<1x8x128xf32>
    %190 = vector.shape_cast %189 : vector<1x8x128xf32> to vector<8x128xf32>
    %c0_96 = arith.constant 0 : index
    %c0_97 = arith.constant 0 : index
    %191 = vector.load %arg8[%c0_96, %c0_97] : memref<8x32xf32, #tpu.memory_space<vmem>>, vector<8x32xf32>
    %cst_98 = arith.constant dense<0.000000e+00> : vector<8x128xf32>
    %192 = tpu.matmul %191, %6, %cst_98 {dimension_numbers = #tpu.dot_dimension_numbers<[1], [0], [0], [1], [0, 0, 1, 1], [], []>} : vector<8x32xf32>, vector<32x128xf32>, vector<8x128xf32> -> vector<8x128xf32>
    %193 = arith.addf %190, %192 : vector<8x128xf32>
    %194 = vector.extract_strided_slice %193 {offsets = [0, 0], sizes = [8, 32], strides = [1, 1]} : vector<8x128xf32> to vector<8x32xf32>
    %195 = arith.negf %194 : vector<8x32xf32>
    %196 = math.exp %195 : vector<8x32xf32>
    %cst_99 = arith.constant 1.000000e+00 : f32
    %197 = vector.broadcast %cst_99 : f32 to vector<8x32xf32>
    %198 = arith.addf %197, %196 : vector<8x32xf32>
    %199 = arith.divf %197, %198 : vector<8x32xf32>
    %200 = vector.extract_strided_slice %193 {offsets = [0, 32], sizes = [8, 32], strides = [1, 1]} : vector<8x128xf32> to vector<8x32xf32>
    %201 = arith.negf %200 : vector<8x32xf32>
    %202 = math.exp %201 : vector<8x32xf32>
    %cst_100 = arith.constant 1.000000e+00 : f32
    %203 = vector.broadcast %cst_100 : f32 to vector<8x32xf32>
    %204 = arith.addf %203, %202 : vector<8x32xf32>
    %205 = arith.divf %203, %204 : vector<8x32xf32>
    %206 = vector.extract_strided_slice %193 {offsets = [0, 64], sizes = [8, 32], strides = [1, 1]} : vector<8x128xf32> to vector<8x32xf32>
    %207 = math.tanh %206 : vector<8x32xf32>
    %208 = vector.extract_strided_slice %193 {offsets = [0, 96], sizes = [8, 32], strides = [1, 1]} : vector<8x128xf32> to vector<8x32xf32>
    %209 = arith.negf %208 : vector<8x32xf32>
    %210 = math.exp %209 : vector<8x32xf32>
    %cst_101 = arith.constant 1.000000e+00 : f32
    %211 = vector.broadcast %cst_101 : f32 to vector<8x32xf32>
    %212 = arith.addf %211, %210 : vector<8x32xf32>
    %213 = arith.divf %211, %212 : vector<8x32xf32>
    %c0_102 = arith.constant 0 : index
    %c0_103 = arith.constant 0 : index
    %214 = vector.load %arg9[%c0_102, %c0_103] : memref<8x32xf32, #tpu.memory_space<vmem>>, vector<8x32xf32>
    %215 = arith.mulf %205, %214 : vector<8x32xf32>
    %216 = arith.mulf %199, %207 : vector<8x32xf32>
    %217 = arith.addf %215, %216 : vector<8x32xf32>
    %218 = math.tanh %217 : vector<8x32xf32>
    %219 = arith.mulf %213, %218 : vector<8x32xf32>
    %c0_104 = arith.constant 0 : index
    %c0_105 = arith.constant 0 : index
    %220 = vector.load %arg9[%c0_104, %c0_105] : memref<8x32xf32, #tpu.memory_space<vmem>>, vector<8x32xf32>
    tpu.vector_store %arg9[%c0_104, %c0_105], %217 {strides = array<i32>} : memref<8x32xf32, #tpu.memory_space<vmem>>, vector<8x32xf32>,
    %c0_106 = arith.constant 0 : index
    %c0_107 = arith.constant 0 : index
    %221 = vector.load %arg8[%c0_106, %c0_107] : memref<8x32xf32, #tpu.memory_space<vmem>>, vector<8x32xf32>
    tpu.vector_store %arg8[%c0_106, %c0_107], %219 {strides = array<i32>} : memref<8x32xf32, #tpu.memory_space<vmem>>, vector<8x32xf32>,
    %c6_i32 = arith.constant 6 : i32
    %222 = arith.index_cast %c6_i32 : i32 to index
    %c0_108 = arith.constant 0 : index
    %c0_109 = arith.constant 0 : index
    %223 = vector.load %arg6[%222, %c0_108, %c0_109] : memref<8x8x128xf32, #tpu.memory_space<vmem>>, vector<1x8x128xf32>
    %224 = vector.shape_cast %223 : vector<1x8x128xf32> to vector<8x128xf32>
    %c0_110 = arith.constant 0 : index
    %c0_111 = arith.constant 0 : index
    %225 = vector.load %arg8[%c0_110, %c0_111] : memref<8x32xf32, #tpu.memory_space<vmem>>, vector<8x32xf32>
    %cst_112 = arith.constant dense<0.000000e+00> : vector<8x128xf32>
    %226 = tpu.matmul %225, %6, %cst_112 {dimension_numbers = #tpu.dot_dimension_numbers<[1], [0], [0], [1], [0, 0, 1, 1], [], []>} : vector<8x32xf32>, vector<32x128xf32>, vector<8x128xf32> -> vector<8x128xf32>
    %227 = arith.addf %224, %226 : vector<8x128xf32>
    %228 = vector.extract_strided_slice %227 {offsets = [0, 0], sizes = [8, 32], strides = [1, 1]} : vector<8x128xf32> to vector<8x32xf32>
    %229 = arith.negf %228 : vector<8x32xf32>
    %230 = math.exp %229 : vector<8x32xf32>
    %cst_113 = arith.constant 1.000000e+00 : f32
    %231 = vector.broadcast %cst_113 : f32 to vector<8x32xf32>
    %232 = arith.addf %231, %230 : vector<8x32xf32>
    %233 = arith.divf %231, %232 : vector<8x32xf32>
    %234 = vector.extract_strided_slice %227 {offsets = [0, 32], sizes = [8, 32], strides = [1, 1]} : vector<8x128xf32> to vector<8x32xf32>
    %235 = arith.negf %234 : vector<8x32xf32>
    %236 = math.exp %235 : vector<8x32xf32>
    %cst_114 = arith.constant 1.000000e+00 : f32
    %237 = vector.broadcast %cst_114 : f32 to vector<8x32xf32>
    %238 = arith.addf %237, %236 : vector<8x32xf32>
    %239 = arith.divf %237, %238 : vector<8x32xf32>
    %240 = vector.extract_strided_slice %227 {offsets = [0, 64], sizes = [8, 32], strides = [1, 1]} : vector<8x128xf32> to vector<8x32xf32>
    %241 = math.tanh %240 : vector<8x32xf32>
    %242 = vector.extract_strided_slice %227 {offsets = [0, 96], sizes = [8, 32], strides = [1, 1]} : vector<8x128xf32> to vector<8x32xf32>
    %243 = arith.negf %242 : vector<8x32xf32>
    %244 = math.exp %243 : vector<8x32xf32>
    %cst_115 = arith.constant 1.000000e+00 : f32
    %245 = vector.broadcast %cst_115 : f32 to vector<8x32xf32>
    %246 = arith.addf %245, %244 : vector<8x32xf32>
    %247 = arith.divf %245, %246 : vector<8x32xf32>
    %c0_116 = arith.constant 0 : index
    %c0_117 = arith.constant 0 : index
    %248 = vector.load %arg9[%c0_116, %c0_117] : memref<8x32xf32, #tpu.memory_space<vmem>>, vector<8x32xf32>
    %249 = arith.mulf %239, %248 : vector<8x32xf32>
    %250 = arith.mulf %233, %241 : vector<8x32xf32>
    %251 = arith.addf %249, %250 : vector<8x32xf32>
    %252 = math.tanh %251 : vector<8x32xf32>
    %253 = arith.mulf %247, %252 : vector<8x32xf32>
    %c0_118 = arith.constant 0 : index
    %c0_119 = arith.constant 0 : index
    %254 = vector.load %arg9[%c0_118, %c0_119] : memref<8x32xf32, #tpu.memory_space<vmem>>, vector<8x32xf32>
    tpu.vector_store %arg9[%c0_118, %c0_119], %251 {strides = array<i32>} : memref<8x32xf32, #tpu.memory_space<vmem>>, vector<8x32xf32>,
    %c0_120 = arith.constant 0 : index
    %c0_121 = arith.constant 0 : index
    %255 = vector.load %arg8[%c0_120, %c0_121] : memref<8x32xf32, #tpu.memory_space<vmem>>, vector<8x32xf32>
    tpu.vector_store %arg8[%c0_120, %c0_121], %253 {strides = array<i32>} : memref<8x32xf32, #tpu.memory_space<vmem>>, vector<8x32xf32>,
    %c7_i32 = arith.constant 7 : i32
    %256 = arith.index_cast %c7_i32 : i32 to index
    %c0_122 = arith.constant 0 : index
    %c0_123 = arith.constant 0 : index
    %257 = vector.load %arg6[%256, %c0_122, %c0_123] : memref<8x8x128xf32, #tpu.memory_space<vmem>>, vector<1x8x128xf32>
    %258 = vector.shape_cast %257 : vector<1x8x128xf32> to vector<8x128xf32>
    %c0_124 = arith.constant 0 : index
    %c0_125 = arith.constant 0 : index
    %259 = vector.load %arg8[%c0_124, %c0_125] : memref<8x32xf32, #tpu.memory_space<vmem>>, vector<8x32xf32>
    %cst_126 = arith.constant dense<0.000000e+00> : vector<8x128xf32>
    %260 = tpu.matmul %259, %6, %cst_126 {dimension_numbers = #tpu.dot_dimension_numbers<[1], [0], [0], [1], [0, 0, 1, 1], [], []>} : vector<8x32xf32>, vector<32x128xf32>, vector<8x128xf32> -> vector<8x128xf32>
    %261 = arith.addf %258, %260 : vector<8x128xf32>
    %262 = vector.extract_strided_slice %261 {offsets = [0, 0], sizes = [8, 32], strides = [1, 1]} : vector<8x128xf32> to vector<8x32xf32>
    %263 = arith.negf %262 : vector<8x32xf32>
    %264 = math.exp %263 : vector<8x32xf32>
    %cst_127 = arith.constant 1.000000e+00 : f32
    %265 = vector.broadcast %cst_127 : f32 to vector<8x32xf32>
    %266 = arith.addf %265, %264 : vector<8x32xf32>
    %267 = arith.divf %265, %266 : vector<8x32xf32>
    %268 = vector.extract_strided_slice %261 {offsets = [0, 32], sizes = [8, 32], strides = [1, 1]} : vector<8x128xf32> to vector<8x32xf32>
    %269 = arith.negf %268 : vector<8x32xf32>
    %270 = math.exp %269 : vector<8x32xf32>
    %cst_128 = arith.constant 1.000000e+00 : f32
    %271 = vector.broadcast %cst_128 : f32 to vector<8x32xf32>
    %272 = arith.addf %271, %270 : vector<8x32xf32>
    %273 = arith.divf %271, %272 : vector<8x32xf32>
    %274 = vector.extract_strided_slice %261 {offsets = [0, 64], sizes = [8, 32], strides = [1, 1]} : vector<8x128xf32> to vector<8x32xf32>
    %275 = math.tanh %274 : vector<8x32xf32>
    %276 = vector.extract_strided_slice %261 {offsets = [0, 96], sizes = [8, 32], strides = [1, 1]} : vector<8x128xf32> to vector<8x32xf32>
    %277 = arith.negf %276 : vector<8x32xf32>
    %278 = math.exp %277 : vector<8x32xf32>
    %cst_129 = arith.constant 1.000000e+00 : f32
    %279 = vector.broadcast %cst_129 : f32 to vector<8x32xf32>
    %280 = arith.addf %279, %278 : vector<8x32xf32>
    %281 = arith.divf %279, %280 : vector<8x32xf32>
    %c0_130 = arith.constant 0 : index
    %c0_131 = arith.constant 0 : index
    %282 = vector.load %arg9[%c0_130, %c0_131] : memref<8x32xf32, #tpu.memory_space<vmem>>, vector<8x32xf32>
    %283 = arith.mulf %273, %282 : vector<8x32xf32>
    %284 = arith.mulf %267, %275 : vector<8x32xf32>
    %285 = arith.addf %283, %284 : vector<8x32xf32>
    %286 = math.tanh %285 : vector<8x32xf32>
    %287 = arith.mulf %281, %286 : vector<8x32xf32>
    %c0_132 = arith.constant 0 : index
    %c0_133 = arith.constant 0 : index
    %288 = vector.load %arg9[%c0_132, %c0_133] : memref<8x32xf32, #tpu.memory_space<vmem>>, vector<8x32xf32>
    tpu.vector_store %arg9[%c0_132, %c0_133], %285 {strides = array<i32>} : memref<8x32xf32, #tpu.memory_space<vmem>>, vector<8x32xf32>,
    %c0_134 = arith.constant 0 : index
    %c0_135 = arith.constant 0 : index
    %289 = vector.load %arg8[%c0_134, %c0_135] : memref<8x32xf32, #tpu.memory_space<vmem>>, vector<8x32xf32>
    tpu.vector_store %arg8[%c0_134, %c0_135], %287 {strides = array<i32>} : memref<8x32xf32, #tpu.memory_space<vmem>>, vector<8x32xf32>,
    %c8_i32 = arith.constant 8 : i32
    %c0_136 = arith.constant 0 : index
    %c0_137 = arith.constant 0 : index
    %290 = vector.load %arg9[%c0_136, %c0_137] : memref<8x32xf32, #tpu.memory_space<vmem>>, vector<8x32xf32>
    %c0_138 = arith.constant 0 : index
    %c0_139 = arith.constant 0 : index
    %c0_140 = arith.constant 0 : index
    %c0_141 = arith.constant 0 : index
    %291 = vector.load %arg5[%c0_138, %c0_139, %c0_140, %c0_141] : memref<1x1x8x32xf32, #tpu.memory_space<vmem>>, vector<1x1x8x32xf32>
    %292 = vector.shape_cast %291 : vector<1x1x8x32xf32> to vector<8x32xf32>
    %293 = vector.shape_cast %290 : vector<8x32xf32> to vector<1x1x8x32xf32>
    tpu.vector_store %arg5[%c0_138, %c0_139, %c0_140, %c0_141], %293 {strides = array<i32>} : memref<1x1x8x32xf32, #tpu.memory_space<vmem>>, vector<1x1x8x32xf32>,
    return
  }
  func.func @transform_0(%arg0: i32) -> (i32, i32, i32, i32) {
    %c0_i32 = arith.constant 0 : i32
    %c0_i32_0 = arith.constant 0 : i32
    %c0_i32_1 = arith.constant 0 : i32
    %c0_i32_2 = arith.constant 0 : i32
    return %arg0, %c0_i32, %c0_i32_0, %c0_i32_1 : i32, i32, i32, i32
  }
  func.func @transform_1(%arg0: i32) -> (i32, i32, i32, i32) {
    %c0_i32 = arith.constant 0 : i32
    %c0_i32_0 = arith.constant 0 : i32
    %c0_i32_1 = arith.constant 0 : i32
    %c0_i32_2 = arith.constant 0 : i32
    return %arg0, %c0_i32, %c0_i32_0, %c0_i32_1 : i32, i32, i32, i32
  }
  func.func @transform_2(%arg0: i32) -> (i32, i32, i32, i32) {
    %c0_i32 = arith.constant 0 : i32
    %c0_i32_0 = arith.constant 0 : i32
    %c0_i32_1 = arith.constant 0 : i32
    %c0_i32_2 = arith.constant 0 : i32
    return %arg0, %c0_i32, %c0_i32_0, %c0_i32_1 : i32, i32, i32, i32
  }
  func.func @transform_3(%arg0: i32) -> (i32, i32, i32, i32) {
    %c0_i32 = arith.constant 0 : i32
    %c0_i32_0 = arith.constant 0 : i32
    %c0_i32_1 = arith.constant 0 : i32
    %c0_i32_2 = arith.constant 0 : i32
    return %arg0, %c0_i32, %c0_i32_0, %c0_i32_1 : i32, i32, i32, i32
  }
  func.func @transform_4(%arg0: i32) -> (i32, i32, i32, i32) {
    %c0_i32 = arith.constant 0 : i32
    %c0_i32_0 = arith.constant 0 : i32
    %c0_i32_1 = arith.constant 0 : i32
    %c0_i32_2 = arith.constant 0 : i32
    return %arg0, %c0_i32, %c0_i32_0, %c0_i32_1 : i32, i32, i32, i32
  }
}

</mosaic_0001>

<llo_original>
// kernel: tpu_custom_call.1
$region0: #{tpu_custom_call.1}
  #allocation0 [shape = 'u32[]', space=smem, size = 0x4, offset = 0x4, fixed_abs, tag = 'smem constant byte address 0x4 - core index']
  #allocation1 [shape = 'u32[72,128]{1,0:T(1,128)}', space=vmem, size = 0x9000, scoped, tag = 'internal scratch']
  #allocation2 [shape = 'f32[8,8,128]{2,1,0:T(8,128)}', space=vmem, size = 0x8000, scoped, tag = 'scratch operand']
  #allocation3 [shape = 'f32[8,8,32]{2,1,0:T(8,128)}', space=vmem, size = 0x8000, scoped, tag = 'scratch operand']
  #allocation4 [shape = 'f32[8,32]{1,0:T(8,128)}', space=vmem, size = 0x1000, scoped, tag = 'scratch operand']
  #allocation5 [shape = 'f32[8,32]{1,0:T(8,128)}', space=vmem, size = 0x1000, scoped, tag = 'scratch operand']
  %s0 = inlined_call_operand.hbm [shape: f32[2,8,8,32], index: 0, kind: input, shape index: {}]
  %s1 = inlined_call_operand.hbm [shape: f32[2,1,32,128], index: 1, kind: input, shape index: {}]
  %s2 = inlined_call_operand.hbm [shape: f32[2,1,32,128], index: 2, kind: input, shape index: {}]
  %s3 = inlined_call_operand.vmem [shape: f32[2,1,1,128], index: 3, kind: input, shape index: {}]
  %s4 = inlined_call_operand.hbm [shape: f32[2,1,8,32], index: 4, kind: output, shape index: {}]
  %s5 = sld [smem:[#allocation0]]
  $region61: #{tpu_custom_call.1} parent=0
    _
  %s7 = ssub.s32 1, %s5
  %s8 = scalar_select 0, %s7, %s5
  $region1: #{tpu_custom_call.1} parent=0
    #allocation6 [shape = 'u8[65536]{0}', space=vmem, size = 0x10000, scoped, tag = 'input window, operand 0']
    #allocation7 [shape = 's32[2]{0}', space=sflag, size = 0x8, scoped, tag = 'scoped memory for tpu_custom_call.1']
    #allocation8 [shape = 's32[2]{0}', space=sflag, size = 0x8, scoped, tag = 'scoped memory for tpu_custom_call.1']
    #allocation9 [shape = 'u8[32768]{0}', space=vmem, size = 0x8000, scoped, tag = 'input window, operand 1']
    #allocation10 [shape = 's32[2]{0}', space=sflag, size = 0x8, scoped, tag = 'scoped memory for tpu_custom_call.1']
    #allocation11 [shape = 'u8[32768]{0}', space=vmem, size = 0x8000, scoped, tag = 'input window, operand 2']
    #allocation12 [shape = 'u8[8192]{0}', space=vmem, size = 0x2000, scoped, tag = 'output window, operand 0']
    %9 = vsyncpa [#allocation7], 0
    %s10 = scalar_lea.sflag [#allocation7], 1
    %11 = vsyncpa %s10, 0
    %12 = vsyncpa [#allocation10], 0
    %s13 = scalar_lea.sflag [#allocation10], 1
    %14 = vsyncpa %s13, 0
    %15 = vsyncpa [#allocation8], 0
    %s16 = scalar_lea.sflag [#allocation8], 1
    %17 = vsyncpa %s16, 0
    loop: start=0, step=1, limit=4
    $region2: #{tpu_custom_call.1} parent=1 // loop_pre_header
      _
    $region3: #{tpu_custom_call.1} parent=1 // loop_header
      %s19 = sphi 0, %s23
      %p20 = scmp.ge.s32.totalorder %s19, 4
      %s29 = sphi 0, %s31
      %s32 = sphi 0, %s29
      %s33 = sphi 0, %s32
      %s49 = sphi 0, %s33
      %s55 = sphi 0, %s57
      %s58 = sphi 0, %s55
      %s59 = sphi 0, %s58
      %s75 = sphi 0, %s59
      %s81 = sphi 0, %s83
      %s84 = sphi 0, %s81
      %s85 = sphi 0, %s84
      %s101 = sphi 0, %s85
      %s107 = sphi 0, %s109
      %s110 = sphi 0, %s107
      %s111 = sphi 0, %s110
      %s127 = sphi 0, %s111
      %s133 = sphi 0, %s135
      %s136 = sphi 0, %s133
      %s137 = sphi 0, %s136
      %s153 = sphi 0, %s137
    $region4: #{tpu_custom_call.1} parent=1 // loop_header_branch
      %22 = sbr.rel (%p20) target = $region8
    $region5: #{tpu_custom_call.1} parent=1 // loop_body
      %s24 = ssub.s32 %s19, 1
      %s25 = ssub.s32 %s19, 2
      %s26 = sadd.s32 %s19, 1
      %s27 = ssub.s32 %s19, %s26
      %p28 = scmp.eq.s32.totalorder %s27, 0
      %s30 = sadd.s32 %s29, 1
      %s31 = scalar_select %p28, %s29, %s30
      %p34 = pneg %p28
      %p35 = scmp.eq.s32.totalorder %s19, 1
      %p36 = por %p34, %p35
      %p37 = scmp.ne.s32.totalorder %s29, %s32
      %p38 = scmp.eq.s32.totalorder %s19, 0
      %p39 = por %p37, %p38
      %p40 = scmp.ne.s32.totalorder %s29, %s32
      %p41 = scmp.eq.s32.totalorder %s24, 1
      %p42 = por %p40, %p41
      %p43 = scmp.ne.s32.totalorder %s32, %s33
      %p44 = scmp.eq.s32.totalorder %s24, 0
      %p45 = por %p43, %p44
      %p46 = scmp.ne.s32.totalorder %s32, %s33
      %p47 = scmp.eq.s32.totalorder %s25, 1
      %p48 = por %p46, %p47
      %p50 = scmp.ne.s32.totalorder %s33, %s49
      %p51 = scmp.eq.s32.totalorder %s25, 0
      %p52 = por %p50, %p51
      %s53 = ssub.s32 %s19, %s26
      %p54 = scmp.eq.s32.totalorder %s53, 0
      %s56 = sadd.s32 %s55, 1
      %s57 = scalar_select %p54, %s55, %s56
      %p60 = pneg %p54
      %p61 = scmp.eq.s32.totalorder %s19, 1
      %p62 = por %p60, %p61
      %p63 = scmp.ne.s32.totalorder %s55, %s58
      %p64 = scmp.eq.s32.totalorder %s19, 0
      %p65 = por %p63, %p64
      %p66 = scmp.ne.s32.totalorder %s55, %s58
      %p67 = scmp.eq.s32.totalorder %s24, 1
      %p68 = por %p66, %p67
      %p69 = scmp.ne.s32.totalorder %s58, %s59
      %p70 = scmp.eq.s32.totalorder %s24, 0
      %p71 = por %p69, %p70
      %p72 = scmp.ne.s32.totalorder %s58, %s59
      %p73 = scmp.eq.s32.totalorder %s25, 1
      %p74 = por %p72, %p73
      %p76 = scmp.ne.s32.totalorder %s59, %s75
      %p77 = scmp.eq.s32.totalorder %s25, 0
      %p78 = por %p76, %p77
      %s79 = ssub.s32 %s19, %s26
      %p80 = scmp.eq.s32.totalorder %s79, 0
      %s82 = sadd.s32 %s81, 1
      %s83 = scalar_select %p80, %s81, %s82
      %p86 = pneg %p80
      %p87 = scmp.eq.s32.totalorder %s19, 1
      %p88 = por %p86, %p87
      %p89 = scmp.ne.s32.totalorder %s81, %s84
      %p90 = scmp.eq.s32.totalorder %s19, 0
      %p91 = por %p89, %p90
      %p92 = scmp.ne.s32.totalorder %s81, %s84
      %p93 = scmp.eq.s32.totalorder %s24, 1
      %p94 = por %p92, %p93
      %p95 = scmp.ne.s32.totalorder %s84, %s85
      %p96 = scmp.eq.s32.totalorder %s24, 0
      %p97 = por %p95, %p96
      %p98 = scmp.ne.s32.totalorder %s84, %s85
      %p99 = scmp.eq.s32.totalorder %s25, 1
      %p100 = por %p98, %p99
      %p102 = scmp.ne.s32.totalorder %s85, %s101
      %p103 = scmp.eq.s32.totalorder %s25, 0
      %p104 = por %p102, %p103
      %s105 = ssub.s32 %s19, %s26
      %p106 = scmp.eq.s32.totalorder %s105, 0
      %s108 = sadd.s32 %s107, 1
      %s109 = scalar_select %p106, %s107, %s108
      %p112 = pneg %p106
      %p113 = scmp.eq.s32.totalorder %s19, 1
      %p114 = por %p112, %p113
      %p115 = scmp.ne.s32.totalorder %s107, %s110
      %p116 = scmp.eq.s32.totalorder %s19, 0
      %p117 = por %p115, %p116
      %p118 = scmp.ne.s32.totalorder %s107, %s110
      %p119 = scmp.eq.s32.totalorder %s24, 1
      %p120 = por %p118, %p119
      %p121 = scmp.ne.s32.totalorder %s110, %s111
      %p122 = scmp.eq.s32.totalorder %s24, 0
      %p123 = por %p121, %p122
      %p124 = scmp.ne.s32.totalorder %s110, %s111
      %p125 = scmp.eq.s32.totalorder %s25, 1
      %p126 = por %p124, %p125
      %p128 = scmp.ne.s32.totalorder %s111, %s127
      %p129 = scmp.eq.s32.totalorder %s25, 0
      %p130 = por %p128, %p129
      %s131 = ssub.s32 %s19, %s26
      %p132 = scmp.eq.s32.totalorder %s131, 0
      %s134 = sadd.s32 %s133, 1
      %s135 = scalar_select %p132, %s133, %s134
      %p138 = pneg %p132
      %p139 = scmp.eq.s32.totalorder %s19, 1
      %p140 = por %p138, %p139
      %p141 = scmp.ne.s32.totalorder %s133, %s136
      %p142 = scmp.eq.s32.totalorder %s19, 0
      %p143 = por %p141, %p142
      %p144 = scmp.ne.s32.totalorder %s133, %s136
      %p145 = scmp.eq.s32.totalorder %s24, 1
      %p146 = por %p144, %p145
      %p147 = scmp.ne.s32.totalorder %s136, %s137
      %p148 = scmp.eq.s32.totalorder %s24, 0
      %p149 = por %p147, %p148
      %p150 = scmp.ne.s32.totalorder %s136, %s137
      %p151 = scmp.eq.s32.totalorder %s25, 1
      %p152 = por %p150, %p151
      %p154 = scmp.ne.s32.totalorder %s137, %s153
      %p155 = scmp.eq.s32.totalorder %s25, 0
      %p156 = por %p154, %p155
      %p157 = scmp.le.s32.totalorder 1, %s19
      %p158 = scmp.lt.s32.totalorder %s19, 3
      %p159 = pnand %p157, %p158
      %p160 = pneg %p159
      // Predicated region
      $region9: #{tpu_custom_call.1} parent=5 // pred_check
        _
      $region10: #{tpu_custom_call.1} parent=5 // pred_check_branch
        %162 = sbr.rel (%p159) target = $region12
      $region11: #{tpu_custom_call.1} parent=5 // pred_region
        %s163 = ssub.s32 %s19, 1
      $region12: #{tpu_custom_call.1} parent=5 // pred_fallthru
        _
      %p164 = scmp.lt.s32.totalorder %s19, 2
      // Predicated region
      $region13: #{tpu_custom_call.1} parent=5 // pred_check
        %p165 = pneg %p164
      $region14: #{tpu_custom_call.1} parent=5 // pred_check_branch
        %167 = sbr.rel (%p165) target = $region16
      $region15: #{tpu_custom_call.1} parent=5 // pred_region
        // Predicated region
        $region17: #{tpu_custom_call.1} parent=15 // pred_check
          %p168 = pneg %p39
        $region18: #{tpu_custom_call.1} parent=15 // pred_check_branch
          %170 = sbr.rel (%p168) target = $region20
        $region19: #{tpu_custom_call.1} parent=15 // pred_region
          %s171 = sand.u32 %s29, 1
          %s172 = scalar_lea.sflag [#allocation7], %s171
          %s173 = sand.u32 %s29, 1
          %s174 = smul.addr %s173, 64
          %s175 = scalar_lea.vmem [#allocation6], %s174
          %177 = vsyncadd %s172, 0
          %s178 = smul.addr %s19, 8
          %s179 = smul.addr %s178, 8
          %s180 = scalar_lea.hbm %s0, %s179
          %s181 = sshll.u32 %s180, 4
          %s182 = int_to_ptr.hbm [resolvable:$true] %s181
          %s183 = sshll.u32 %s175, 4
          %s184 = int_to_ptr.vmem [resolvable:$true] %s183
          %189 = dma.hbm_to_vmem [thread:$0]  %s182, 1024, %s184, %s172, 128, 128, 8
        $region20: #{tpu_custom_call.1} parent=15 // pred_fallthru
          _
        // Predicated region
        $region21: #{tpu_custom_call.1} parent=15 // pred_check
          %p190 = pneg %p65
        $region22: #{tpu_custom_call.1} parent=15 // pred_check_branch
          %192 = sbr.rel (%p190) target = $region24
        $region23: #{tpu_custom_call.1} parent=15 // pred_region
          %s193 = sand.u32 %s19, 1
          %s194 = scalar_lea.sflag [#allocation10], %s193
          %s195 = sand.u32 %s55, 1
          %s196 = smul.addr %s195, 32
          %s197 = scalar_lea.vmem [#allocation9], %s196
          %199 = vsyncadd %s194, 0
          %s200 = smul.addr %s19, 4
          %s201 = smul.addr %s200, 8
          %s202 = scalar_lea.hbm %s1, %s201
          %s203 = sshll.u32 %s202, 4
          %s204 = int_to_ptr.hbm [resolvable:$true] %s203
          %s205 = sshll.u32 %s197, 4
          %s206 = int_to_ptr.vmem [resolvable:$true] %s205
          %211 = dma.hbm_to_vmem [thread:$0]  %s204, 512, %s206, %s194, 128, 128, 8
        $region24: #{tpu_custom_call.1} parent=15 // pred_fallthru
          _
        // Predicated region
        $region25: #{tpu_custom_call.1} parent=15 // pred_check
          %p212 = pneg %p91
        $region26: #{tpu_custom_call.1} parent=15 // pred_check_branch
          %214 = sbr.rel (%p212) target = $region28
        $region27: #{tpu_custom_call.1} parent=15 // pred_region
          %s215 = sand.u32 %s19, 1
          %s216 = scalar_lea.sflag [#allocation10], %s215
          %s217 = sand.u32 %s81, 1
          %s218 = smul.addr %s217, 32
          %s219 = scalar_lea.vmem [#allocation11], %s218
          %221 = vsyncadd %s216, 0
          %s222 = smul.addr %s19, 4
          %s223 = smul.addr %s222, 8
          %s224 = scalar_lea.hbm %s2, %s223
          %s225 = sshll.u32 %s224, 4
          %s226 = int_to_ptr.hbm [resolvable:$true] %s225
          %s227 = sshll.u32 %s219, 4
          %s228 = int_to_ptr.vmem [resolvable:$true] %s227
          %233 = dma.hbm_to_vmem [thread:$0]  %s226, 512, %s228, %s216, 128, 128, 8
        $region28: #{tpu_custom_call.1} parent=15 // pred_fallthru
          _
        // Predicated region
        $region29: #{tpu_custom_call.1} parent=15 // pred_check
          %p234 = pneg %p117
        $region30: #{tpu_custom_call.1} parent=15 // pred_check_branch
          %236 = sbr.rel (%p234) target = $region32
        $region31: #{tpu_custom_call.1} parent=15 // pred_region
          %p237 = scmp.lt.s32.totalorder %s19, 1
          %s238 = scalar_select %p237, %s19, 1
          %s239 = scalar_lea.vmem %s3, %s238
        $region32: #{tpu_custom_call.1} parent=15 // pred_fallthru
          _
      $region16: #{tpu_custom_call.1} parent=5 // pred_fallthru
        _
      %p240 = scmp.le.s32.totalorder 1, %s19
      %p241 = scmp.lt.s32.totalorder %s19, 3
      %p242 = pnand %p240, %p241
      %p243 = pneg %p242
      // Predicated region
      $region33: #{tpu_custom_call.1} parent=5 // pred_check
        _
      $region34: #{tpu_custom_call.1} parent=5 // pred_check_branch
        %245 = sbr.rel (%p242) target = $region36
      $region35: #{tpu_custom_call.1} parent=5 // pred_region
        %s246 = ssub.s32 %s19, 1
        %s247 = sand.u32 %s32, 1
        %s248 = scalar_lea.sflag [#allocation7], %s247
        %s249 = sand.u32 %s32, 1
        %s250 = smul.addr %s249, 64
        %s251 = scalar_lea.vmem [#allocation6], %s250
        // Predicated region
        $region37: #{tpu_custom_call.1} parent=35 // pred_check
          %p252 = pneg %p45
        $region38: #{tpu_custom_call.1} parent=35 // pred_check_branch
          %254 = sbr.rel (%p252) target = $region40
        $region39: #{tpu_custom_call.1} parent=35 // pred_region
          %256 = dma.done %s248, 1024
        $region40: #{tpu_custom_call.1} parent=35 // pred_fallthru
          _
        %s257 = sand.u32 %s24, 1
        %s258 = scalar_lea.sflag [#allocation10], %s257
        %s259 = sand.u32 %s58, 1
        %s260 = smul.addr %s259, 32
        %s261 = scalar_lea.vmem [#allocation9], %s260
        // Predicated region
        $region41: #{tpu_custom_call.1} parent=35 // pred_check
          %p262 = pneg %p71
        $region42: #{tpu_custom_call.1} parent=35 // pred_check_branch
          %264 = sbr.rel (%p262) target = $region44
        $region43: #{tpu_custom_call.1} parent=35 // pred_region
          %266 = dma.done %s258, 512
        $region44: #{tpu_custom_call.1} parent=35 // pred_fallthru
          _
        %s267 = sand.u32 %s24, 1
        %s268 = scalar_lea.sflag [#allocation10], %s267
        %s269 = sand.u32 %s84, 1
        %s270 = smul.addr %s269, 32
        %s271 = scalar_lea.vmem [#allocation11], %s270
        // Predicated region
        $region45: #{tpu_custom_call.1} parent=35 // pred_check
          %p272 = pneg %p97
        $region46: #{tpu_custom_call.1} parent=35 // pred_check_branch
          %274 = sbr.rel (%p272) target = $region48
        $region47: #{tpu_custom_call.1} parent=35 // pred_region
          %276 = dma.done %s268, 512
        $region48: #{tpu_custom_call.1} parent=35 // pred_fallthru
          _
        %s277 = sand.u32 %s32, 1
        %s278 = scalar_lea.sflag [#allocation7], %s277
        %s279 = sand.u32 %s32, 1
        %s280 = smul.addr %s279, 64
        %s281 = scalar_lea.vmem [#allocation6], %s280
        %p282 = pneg %p45
        %p283 = pneg %p42
        %s284 = sand.u32 %s24, 1
        %s285 = scalar_lea.sflag [#allocation10], %s284
        %s286 = sand.u32 %s58, 1
        %s287 = smul.addr %s286, 32
        %s288 = scalar_lea.vmem [#allocation9], %s287
        %p289 = pneg %p71
        %p290 = pneg %p68
        %s291 = sand.u32 %s24, 1
        %s292 = scalar_lea.sflag [#allocation10], %s291
        %s293 = sand.u32 %s84, 1
        %s294 = smul.addr %s293, 32
        %s295 = scalar_lea.vmem [#allocation11], %s294
        %p296 = pneg %p97
        %p297 = pneg %p94
        %p298 = scmp.lt.s32.totalorder %s24, 1
        %s299 = scalar_select %p298, %s24, 1
        %s300 = scalar_lea.vmem %s3, %s299
        %p301 = pneg %p123
        %p302 = pneg %p120
        %p303 = pneg %p149
        %p304 = pneg %p146
        %s305 = sand.u32 %s136, 1
        %s306 = scalar_lea.sflag [#allocation8], %s305
        %s307 = sand.u32 %s136, 1
        %s308 = smul.addr %s307, 8
        %s309 = scalar_lea.vmem [#allocation12], %s308
        %p310 = scmp.lt.s32.totalorder %s24, 1
        %s311 = scalar_select %p310, %s24, 1
        %s312 = scalar_lea.vmem %s3, %s311
        %v313 = vld [vmem:[%s251] sm:$0xff]
        %v314 = vld [vmem:[%s251 + $0x8] sm:$0xff]
        %v315 = vld [vmem:[%s251 + $0x10] sm:$0xff]
        %v316 = vld [vmem:[%s251 + $0x18] sm:$0xff]
        %v317 = vld [vmem:[%s251 + $0x20] sm:$0xff]
        %v318 = vld [vmem:[%s251 + $0x28] sm:$0xff]
        %v319 = vld [vmem:[%s251 + $0x30] sm:$0xff]
        %v320 = vld [vmem:[%s251 + $0x38] sm:$0xff]
        %v321 = vld [vmem:[%s261] sm:$0xff]
        %v322 = vld [vmem:[%s261 + $0x8] sm:$0xff]
        %v323 = vld [vmem:[%s261 + $0x10] sm:$0xff]
        %v324 = vld [vmem:[%s261 + $0x18] sm:$0xff]
        %v325 = vld [vmem:[%s271] sm:$0xff]
        %v326 = vld [vmem:[%s271 + $0x8] sm:$0xff]
        %v327 = vld [vmem:[%s271 + $0x10] sm:$0xff]
        %v328 = vld [vmem:[%s271 + $0x18] sm:$0xff]
        %v329 = vld [vmem:[%s312] sm:$0x1]
        %v331 = vperm.slane %v329, 0
        %vm333 = vcmask 261120
        %v335 = vsel %vm333, %v313, 0
        %v338 = vsel %vm333, %v314, 0
        %v341 = vsel %vm333, %v315, 0
        %v344 = vsel %vm333, %v316, 0
        %v347 = vsel %vm333, %v317, 0
        %v350 = vsel %vm333, %v318, 0
        %v353 = vsel %vm333, %v319, 0
        %v356 = vsel %vm333, %v320, 0
        %358 = vmatpush.msra.mxu0 0.0
        %359 = vmatpush.msra.mxu0 0.0
        %360 = vmatpush.msra.mxu0 0.0
        %361 = vmatpush.msra.mxu0 0.0
        %362 = vmatpush.msra.mxu0 0.0
        %363 = vmatpush.msra.mxu0 0.0
        %364 = vmatpush.msra.mxu0 0.0
        %365 = vmatpush.msra.mxu0 0.0
        %366 = vmatpush.msra.mxu0 0.0
        %367 = vmatpush.msra.mxu0 0.0
        %368 = vmatpush.msra.mxu0 0.0
        %369 = vmatpush.msra.mxu0 0.0
        %370 = vmatpush.msra.mxu0 %v324
        %371 = vmatpush.msra.mxu0 %v323
        %372 = vmatpush.msra.mxu0 %v322
        %373 = vmatpush.msra.mxu0 %v321
        %374 = vmatmul.f32.gmra.mxu0 %v335
        %v375 = vpop.f32.mrf.mxu0
        %v376 = vadd.f32 %v331, %v375
        %377 = vmatmul.f32.gmra.mxu0 %v338
        %v378 = vpop.f32.mrf.mxu0
        %v379 = vadd.f32 %v331, %v378
        %380 = vmatmul.f32.gmra.mxu0 %v341
        %v381 = vpop.f32.mrf.mxu0
        %v382 = vadd.f32 %v331, %v381
        %383 = vmatmul.f32.gmra.mxu0 %v344
        %v384 = vpop.f32.mrf.mxu0
        %v385 = vadd.f32 %v331, %v384
        %386 = vmatmul.f32.gmra.mxu0 %v347
        %v387 = vpop.f32.mrf.mxu0
        %v388 = vadd.f32 %v331, %v387
        %389 = vmatmul.f32.gmra.mxu0 %v350
        %v390 = vpop.f32.mrf.mxu0
        %v391 = vadd.f32 %v331, %v390
        %392 = vmatmul.f32.gmra.mxu0 %v353
        %v393 = vpop.f32.mrf.mxu0
        %v394 = vadd.f32 %v331, %v393
        %395 = vmatmul.f32.gmra.mxu0 %v356
        %v396 = vpop.f32.mrf.mxu0
        %v397 = vadd.f32 %v331, %v396
        %398 = vdwg.mxu0
        %399 = vst [vmem:[#allocation2] sm:$0xff] %v376
        %400 = vst [vmem:[#allocation2 + $0x8] sm:$0xff] %v379
        %401 = vst [vmem:[#allocation2 + $0x10] sm:$0xff] %v382
        %402 = vst [vmem:[#allocation2 + $0x18] sm:$0xff] %v385
        %403 = vst [vmem:[#allocation2 + $0x20] sm:$0xff] %v388
        %404 = vst [vmem:[#allocation2 + $0x28] sm:$0xff] %v391
        %405 = vst [vmem:[#allocation2 + $0x30] sm:$0xff] %v394
        %406 = vst [vmem:[#allocation2 + $0x38] sm:$0xff] %v397
        %407 = vst.msk [vmem:[#allocation4] sm:$0xff] %vm333, 0.0
        %408 = vst.msk [vmem:[#allocation5] sm:$0xff] %vm333, 0.0
        %v409 = vld [vmem:[#allocation2] sm:$0xff]
        %v410 = vld [vmem:[#allocation4] sm:$0xff]
        %v412 = vsel %vm333, %v410, 0
        %414 = vmatpush.msra.mxu0 0.0
        %415 = vmatpush.msra.mxu0 0.0
        %416 = vmatpush.msra.mxu0 0.0
        %417 = vmatpush.msra.mxu0 0.0
        %418 = vmatpush.msra.mxu0 0.0
        %419 = vmatpush.msra.mxu0 0.0
        %420 = vmatpush.msra.mxu0 0.0
        %421 = vmatpush.msra.mxu0 0.0
        %422 = vmatpush.msra.mxu0 0.0
        %423 = vmatpush.msra.mxu0 0.0
        %424 = vmatpush.msra.mxu0 0.0
        %425 = vmatpush.msra.mxu0 0.0
        %426 = vmatpush.msra.mxu0 %v328
        %427 = vmatpush.msra.mxu0 %v327
        %428 = vmatpush.msra.mxu0 %v326
        %429 = vmatpush.msra.mxu0 %v325
        %430 = vmatmul.f32.gmra.mxu0 %v412
        %v431 = vpop.f32.mrf.mxu0
        %v432 = vadd.f32 0.0, %v431
        %433 = vdwg.mxu0
        %v434 = vadd.f32 %v409, %v432
        %v435 = vxor.u32 %v434, 2147483648
        %v436 = vmul.f32 %v435, 1.442695
        %v437 = vpow.pop %v436
        %v438 = vadd.f32 %v437, 1.0
        %v439 = vrcp.pop %v438
        %v440 = vmul.f32 %v438, %v439
        %v441 = vsub.f32 1.0, %v440
        %v442 = vmul.f32 %v439, %v441
        %v443 = vadd.f32 %v439, %v442
        %vm444 = vweird.f32 %v438
        %vm445 = vweird.f32 %v439
        %vm446 = vmor %vm444, %vm445
        %v447 = vsel %vm446, %v439, %v443
        %v448 = vand.u32 2147483647, %v438
        %vm449 = vcmp.eq.f32.partialorder %v448, 8.507059e+37
        %v450 = vand.u32 %v438, 2147483648
        %v451 = vor.u32 1.1754944e-38, %v450
        %v452 = vsel %vm449, %v451, %v447
        %v453 = vmul.f32 1.0, %v452
        %v454 = vtanh.pop %v434
        %v455 = vld [vmem:[#allocation5] sm:$0xff]
        %457 = vrot.lane.b32.xlu0 %v455, 32
        %v458 = vpop.permute.xlu0 %457
        %v460 = vmul.f32 %v453, %v458
        %462 = vrot.lane.b32.xlu0 %v454, 64
        %v463 = vpop.permute.xlu0 %462
        %v465 = vmul.f32 %v453, %v463
        %467 = vrot.lane.b32.xlu0 %v465, 32
        %v468 = vpop.permute.xlu0 %467
        %v470 = vadd.f32 %v460, %v468
        %v471 = vtanh.pop %v470
        %473 = vrot.lane.b32.xlu0 %v471, 64
        %v474 = vpop.permute.xlu0 %473
        %v476 = vmul.f32 %v453, %v474
        %478 = vrot.lane.b32.xlu0 %v470, 96
        %v479 = vpop.permute.xlu0 %478
        %481 = vst.msk [vmem:[#allocation5] sm:$0xff] %vm333, %v479
        %483 = vrot.lane.b32.xlu0 %v476, 32
        %v484 = vpop.permute.xlu0 %483
        %486 = vst.msk [vmem:[#allocation4] sm:$0xff] %vm333, %v484
        %s487 = scalar_lea.vmem [#allocation2], 8
        %v488 = vld [vmem:[%s487] sm:$0xff]
        %v489 = vld [vmem:[#allocation4] sm:$0xff]
        %v491 = vsel %vm333, %v489, 0
        %493 = vmatpush.msra.mxu0 0.0
        %494 = vmatpush.msra.mxu0 0.0
        %495 = vmatpush.msra.mxu0 0.0
        %496 = vmatpush.msra.mxu0 0.0
        %497 = vmatpush.msra.mxu0 0.0
        %498 = vmatpush.msra.mxu0 0.0
        %499 = vmatpush.msra.mxu0 0.0
        %500 = vmatpush.msra.mxu0 0.0
        %501 = vmatpush.msra.mxu0 0.0
        %502 = vmatpush.msra.mxu0 0.0
        %503 = vmatpush.msra.mxu0 0.0
        %504 = vmatpush.msra.mxu0 0.0
        %505 = vmatpush.msra.mxu0 %v328
        %506 = vmatpush.msra.mxu0 %v327
        %507 = vmatpush.msra.mxu0 %v326
        %508 = vmatpush.msra.mxu0 %v325
        %509 = vmatmul.f32.gmra.mxu0 %v491
        %v510 = vpop.f32.mrf.mxu0
        %v511 = vadd.f32 0.0, %v510
        %512 = vdwg.mxu0
        %v513 = vadd.f32 %v488, %v511
        %v514 = vxor.u32 %v513, 2147483648
        %v515 = vmul.f32 %v514, 1.442695
        %v516 = vpow.pop %v515
        %v517 = vadd.f32 %v516, 1.0
        %v518 = vrcp.pop %v517
        %v519 = vmul.f32 %v517, %v518
        %v520 = vsub.f32 1.0, %v519
        %v521 = vmul.f32 %v518, %v520
        %v522 = vadd.f32 %v518, %v521
        %vm523 = vweird.f32 %v517
        %vm524 = vweird.f32 %v518
        %vm525 = vmor %vm523, %vm524
        %v526 = vsel %vm525, %v518, %v522
        %v527 = vand.u32 2147483647, %v517
        %vm528 = vcmp.eq.f32.partialorder %v527, 8.507059e+37
        %v529 = vand.u32 %v517, 2147483648
        %v530 = vor.u32 1.1754944e-38, %v529
        %v531 = vsel %vm528, %v530, %v526
        %v532 = vmul.f32 1.0, %v531
        %v533 = vtanh.pop %v513
        %v534 = vld [vmem:[#allocation5] sm:$0xff]
        %536 = vrot.lane.b32.xlu0 %v534, 32
        %v537 = vpop.permute.xlu0 %536
        %v539 = vmul.f32 %v532, %v537
        %541 = vrot.lane.b32.xlu0 %v533, 64
        %v542 = vpop.permute.xlu0 %541
        %v544 = vmul.f32 %v532, %v542
        %546 = vrot.lane.b32.xlu0 %v544, 32
        %v547 = vpop.permute.xlu0 %546
        %v549 = vadd.f32 %v539, %v547
        %v550 = vtanh.pop %v549
        %552 = vrot.lane.b32.xlu0 %v550, 64
        %v553 = vpop.permute.xlu0 %552
        %v555 = vmul.f32 %v532, %v553
        %557 = vrot.lane.b32.xlu0 %v549, 96
        %v558 = vpop.permute.xlu0 %557
        %560 = vst.msk [vmem:[#allocation5] sm:$0xff] %vm333, %v558
        %562 = vrot.lane.b32.xlu0 %v555, 32
        %v563 = vpop.permute.xlu0 %562
        %565 = vst.msk [vmem:[#allocation4] sm:$0xff] %vm333, %v563
        %s566 = scalar_lea.vmem [#allocation2], 16
        %v567 = vld [vmem:[%s566] sm:$0xff]
        %v568 = vld [vmem:[#allocation4] sm:$0xff]
        %v570 = vsel %vm333, %v568, 0
        %572 = vmatpush.msra.mxu0 0.0
        %573 = vmatpush.msra.mxu0 0.0
        %574 = vmatpush.msra.mxu0 0.0
        %575 = vmatpush.msra.mxu0 0.0
        %576 = vmatpush.msra.mxu0 0.0
        %577 = vmatpush.msra.mxu0 0.0
        %578 = vmatpush.msra.mxu0 0.0
        %579 = vmatpush.msra.mxu0 0.0
        %580 = vmatpush.msra.mxu0 0.0
        %581 = vmatpush.msra.mxu0 0.0
        %582 = vmatpush.msra.mxu0 0.0
        %583 = vmatpush.msra.mxu0 0.0
        %584 = vmatpush.msra.mxu0 %v328
        %585 = vmatpush.msra.mxu0 %v327
        %586 = vmatpush.msra.mxu0 %v326
        %587 = vmatpush.msra.mxu0 %v325
        %588 = vmatmul.f32.gmra.mxu0 %v570
        %v589 = vpop.f32.mrf.mxu0
        %v590 = vadd.f32 0.0, %v589
        %591 = vdwg.mxu0
        %v592 = vadd.f32 %v567, %v590
        %v593 = vxor.u32 %v592, 2147483648
        %v594 = vmul.f32 %v593, 1.442695
        %v595 = vpow.pop %v594
        %v596 = vadd.f32 %v595, 1.0
        %v597 = vrcp.pop %v596
        %v598 = vmul.f32 %v596, %v597
        %v599 = vsub.f32 1.0, %v598
        %v600 = vmul.f32 %v597, %v599
        %v601 = vadd.f32 %v597, %v600
        %vm602 = vweird.f32 %v596
        %vm603 = vweird.f32 %v597
        %vm604 = vmor %vm602, %vm603
        %v605 = vsel %vm604, %v597, %v601
        %v606 = vand.u32 2147483647, %v596
        %vm607 = vcmp.eq.f32.partialorder %v606, 8.507059e+37
        %v608 = vand.u32 %v596, 2147483648
        %v609 = vor.u32 1.1754944e-38, %v608
        %v610 = vsel %vm607, %v609, %v605
        %v611 = vmul.f32 1.0, %v610
        %v612 = vtanh.pop %v592
        %v613 = vld [vmem:[#allocation5] sm:$0xff]
        %615 = vrot.lane.b32.xlu0 %v613, 32
        %v616 = vpop.permute.xlu0 %615
        %v618 = vmul.f32 %v611, %v616
        %620 = vrot.lane.b32.xlu0 %v612, 64
        %v621 = vpop.permute.xlu0 %620
        %v623 = vmul.f32 %v611, %v621
        %625 = vrot.lane.b32.xlu0 %v623, 32
        %v626 = vpop.permute.xlu0 %625
        %v628 = vadd.f32 %v618, %v626
        %v629 = vtanh.pop %v628
        %631 = vrot.lane.b32.xlu0 %v629, 64
        %v632 = vpop.permute.xlu0 %631
        %v634 = vmul.f32 %v611, %v632
        %636 = vrot.lane.b32.xlu0 %v628, 96
        %v637 = vpop.permute.xlu0 %636
        %639 = vst.msk [vmem:[#allocation5] sm:$0xff] %vm333, %v637
        %641 = vrot.lane.b32.xlu0 %v634, 32
        %v642 = vpop.permute.xlu0 %641
        %644 = vst.msk [vmem:[#allocation4] sm:$0xff] %vm333, %v642
        %s645 = scalar_lea.vmem [#allocation2], 24
        %v646 = vld [vmem:[%s645] sm:$0xff]
        %v647 = vld [vmem:[#allocation4] sm:$0xff]
        %v649 = vsel %vm333, %v647, 0
        %651 = vmatpush.msra.mxu0 0.0
        %652 = vmatpush.msra.mxu0 0.0
        %653 = vmatpush.msra.mxu0 0.0
        %654 = vmatpush.msra.mxu0 0.0
        %655 = vmatpush.msra.mxu0 0.0
        %656 = vmatpush.msra.mxu0 0.0
        %657 = vmatpush.msra.mxu0 0.0
        %658 = vmatpush.msra.mxu0 0.0
        %659 = vmatpush.msra.mxu0 0.0
        %660 = vmatpush.msra.mxu0 0.0
        %661 = vmatpush.msra.mxu0 0.0
        %662 = vmatpush.msra.mxu0 0.0
        %663 = vmatpush.msra.mxu0 %v328
        %664 = vmatpush.msra.mxu0 %v327
        %665 = vmatpush.msra.mxu0 %v326
        %666 = vmatpush.msra.mxu0 %v325
        %667 = vmatmul.f32.gmra.mxu0 %v649
        %v668 = vpop.f32.mrf.mxu0
        %v669 = vadd.f32 0.0, %v668
        %670 = vdwg.mxu0
        %v671 = vadd.f32 %v646, %v669
        %v672 = vxor.u32 %v671, 2147483648
        %v673 = vmul.f32 %v672, 1.442695
        %v674 = vpow.pop %v673
        %v675 = vadd.f32 %v674, 1.0
        %v676 = vrcp.pop %v675
        %v677 = vmul.f32 %v675, %v676
        %v678 = vsub.f32 1.0, %v677
        %v679 = vmul.f32 %v676, %v678
        %v680 = vadd.f32 %v676, %v679
        %vm681 = vweird.f32 %v675
        %vm682 = vweird.f32 %v676
        %vm683 = vmor %vm681, %vm682
        %v684 = vsel %vm683, %v676, %v680
        %v685 = vand.u32 2147483647, %v675
        %vm686 = vcmp.eq.f32.partialorder %v685, 8.507059e+37
        %v687 = vand.u32 %v675, 2147483648
        %v688 = vor.u32 1.1754944e-38, %v687
        %v689 = vsel %vm686, %v688, %v684
        %v690 = vmul.f32 1.0, %v689
        %v691 = vtanh.pop %v671
        %v692 = vld [vmem:[#allocation5] sm:$0xff]
        %694 = vrot.lane.b32.xlu0 %v692, 32
        %v695 = vpop.permute.xlu0 %694
        %v697 = vmul.f32 %v690, %v695
        %699 = vrot.lane.b32.xlu0 %v691, 64
        %v700 = vpop.permute.xlu0 %699
        %v702 = vmul.f32 %v690, %v700
        %704 = vrot.lane.b32.xlu0 %v702, 32
        %v705 = vpop.permute.xlu0 %704
        %v707 = vadd.f32 %v697, %v705
        %v708 = vtanh.pop %v707
        %710 = vrot.lane.b32.xlu0 %v708, 64
        %v711 = vpop.permute.xlu0 %710
        %v713 = vmul.f32 %v690, %v711
        %715 = vrot.lane.b32.xlu0 %v707, 96
        %v716 = vpop.permute.xlu0 %715
        %718 = vst.msk [vmem:[#allocation5] sm:$0xff] %vm333, %v716
        %720 = vrot.lane.b32.xlu0 %v713, 32
        %v721 = vpop.permute.xlu0 %720
        %723 = vst.msk [vmem:[#allocation4] sm:$0xff] %vm333, %v721
        %s724 = scalar_lea.vmem [#allocation2], 32
        %v725 = vld [vmem:[%s724] sm:$0xff]
        %v726 = vld [vmem:[#allocation4] sm:$0xff]
        %v728 = vsel %vm333, %v726, 0
        %730 = vmatpush.msra.mxu0 0.0
        %731 = vmatpush.msra.mxu0 0.0
        %732 = vmatpush.msra.mxu0 0.0
        %733 = vmatpush.msra.mxu0 0.0
        %734 = vmatpush.msra.mxu0 0.0
        %735 = vmatpush.msra.mxu0 0.0
        %736 = vmatpush.msra.mxu0 0.0
        %737 = vmatpush.msra.mxu0 0.0
        %738 = vmatpush.msra.mxu0 0.0
        %739 = vmatpush.msra.mxu0 0.0
        %740 = vmatpush.msra.mxu0 0.0
        %741 = vmatpush.msra.mxu0 0.0
        %742 = vmatpush.msra.mxu0 %v328
        %743 = vmatpush.msra.mxu0 %v327
        %744 = vmatpush.msra.mxu0 %v326
        %745 = vmatpush.msra.mxu0 %v325
        %746 = vmatmul.f32.gmra.mxu0 %v728
        %v747 = vpop.f32.mrf.mxu0
        %v748 = vadd.f32 0.0, %v747
        %749 = vdwg.mxu0
        %v750 = vadd.f32 %v725, %v748
        %v751 = vxor.u32 %v750, 2147483648
        %v752 = vmul.f32 %v751, 1.442695
        %v753 = vpow.pop %v752
        %v754 = vadd.f32 %v753, 1.0
        %v755 = vrcp.pop %v754
        %v756 = vmul.f32 %v754, %v755
        %v757 = vsub.f32 1.0, %v756
        %v758 = vmul.f32 %v755, %v757
        %v759 = vadd.f32 %v755, %v758
        %vm760 = vweird.f32 %v754
        %vm761 = vweird.f32 %v755
        %vm762 = vmor %vm760, %vm761
        %v763 = vsel %vm762, %v755, %v759
        %v764 = vand.u32 2147483647, %v754
        %vm765 = vcmp.eq.f32.partialorder %v764, 8.507059e+37
        %v766 = vand.u32 %v754, 2147483648
        %v767 = vor.u32 1.1754944e-38, %v766
        %v768 = vsel %vm765, %v767, %v763
        %v769 = vmul.f32 1.0, %v768
        %v770 = vtanh.pop %v750
        %v771 = vld [vmem:[#allocation5] sm:$0xff]
        %773 = vrot.lane.b32.xlu0 %v771, 32
        %v774 = vpop.permute.xlu0 %773
        %v776 = vmul.f32 %v769, %v774
        %778 = vrot.lane.b32.xlu0 %v770, 64
        %v779 = vpop.permute.xlu0 %778
        %v781 = vmul.f32 %v769, %v779
        %783 = vrot.lane.b32.xlu0 %v781, 32
        %v784 = vpop.permute.xlu0 %783
        %v786 = vadd.f32 %v776, %v784
        %v787 = vtanh.pop %v786
        %789 = vrot.lane.b32.xlu0 %v787, 64
        %v790 = vpop.permute.xlu0 %789
        %v792 = vmul.f32 %v769, %v790
        %794 = vrot.lane.b32.xlu0 %v786, 96
        %v795 = vpop.permute.xlu0 %794
        %797 = vst.msk [vmem:[#allocation5] sm:$0xff] %vm333, %v795
        %799 = vrot.lane.b32.xlu0 %v792, 32
        %v800 = vpop.permute.xlu0 %799
        %802 = vst.msk [vmem:[#allocation4] sm:$0xff] %vm333, %v800
        %s803 = scalar_lea.vmem [#allocation2], 40
        %v804 = vld [vmem:[%s803] sm:$0xff]
        %v805 = vld [vmem:[#allocation4] sm:$0xff]
        %v807 = vsel %vm333, %v805, 0
        %809 = vmatpush.msra.mxu0 0.0
        %810 = vmatpush.msra.mxu0 0.0
        %811 = vmatpush.msra.mxu0 0.0
        %812 = vmatpush.msra.mxu0 0.0
        %813 = vmatpush.msra.mxu0 0.0
        %814 = vmatpush.msra.mxu0 0.0
        %815 = vmatpush.msra.mxu0 0.0
        %816 = vmatpush.msra.mxu0 0.0
        %817 = vmatpush.msra.mxu0 0.0
        %818 = vmatpush.msra.mxu0 0.0
        %819 = vmatpush.msra.mxu0 0.0
        %820 = vmatpush.msra.mxu0 0.0
        %821 = vmatpush.msra.mxu0 %v328
        %822 = vmatpush.msra.mxu0 %v327
        %823 = vmatpush.msra.mxu0 %v326
        %824 = vmatpush.msra.mxu0 %v325
        %825 = vmatmul.f32.gmra.mxu0 %v807
        %v826 = vpop.f32.mrf.mxu0
        %v827 = vadd.f32 0.0, %v826
        %828 = vdwg.mxu0
        %v829 = vadd.f32 %v804, %v827
        %v830 = vxor.u32 %v829, 2147483648
        %v831 = vmul.f32 %v830, 1.442695
        %v832 = vpow.pop %v831
        %v833 = vadd.f32 %v832, 1.0
        %v834 = vrcp.pop %v833
        %v835 = vmul.f32 %v833, %v834
        %v836 = vsub.f32 1.0, %v835
        %v837 = vmul.f32 %v834, %v836
        %v838 = vadd.f32 %v834, %v837
        %vm839 = vweird.f32 %v833
        %vm840 = vweird.f32 %v834
        %vm841 = vmor %vm839, %vm840
        %v842 = vsel %vm841, %v834, %v838
        %v843 = vand.u32 2147483647, %v833
        %vm844 = vcmp.eq.f32.partialorder %v843, 8.507059e+37
        %v845 = vand.u32 %v833, 2147483648
        %v846 = vor.u32 1.1754944e-38, %v845
        %v847 = vsel %vm844, %v846, %v842
        %v848 = vmul.f32 1.0, %v847
        %v849 = vtanh.pop %v829
        %v850 = vld [vmem:[#allocation5] sm:$0xff]
        %852 = vrot.lane.b32.xlu0 %v850, 32
        %v853 = vpop.permute.xlu0 %852
        %v855 = vmul.f32 %v848, %v853
        %857 = vrot.lane.b32.xlu0 %v849, 64
        %v858 = vpop.permute.xlu0 %857
        %v860 = vmul.f32 %v848, %v858
        %862 = vrot.lane.b32.xlu0 %v860, 32
        %v863 = vpop.permute.xlu0 %862
        %v865 = vadd.f32 %v855, %v863
        %v866 = vtanh.pop %v865
        %868 = vrot.lane.b32.xlu0 %v866, 64
        %v869 = vpop.permute.xlu0 %868
        %v871 = vmul.f32 %v848, %v869
        %873 = vrot.lane.b32.xlu0 %v865, 96
        %v874 = vpop.permute.xlu0 %873
        %876 = vst.msk [vmem:[#allocation5] sm:$0xff] %vm333, %v874
        %878 = vrot.lane.b32.xlu0 %v871, 32
        %v879 = vpop.permute.xlu0 %878
        %881 = vst.msk [vmem:[#allocation4] sm:$0xff] %vm333, %v879
        %s882 = scalar_lea.vmem [#allocation2], 48
        %v883 = vld [vmem:[%s882] sm:$0xff]
        %v884 = vld [vmem:[#allocation4] sm:$0xff]
        %v886 = vsel %vm333, %v884, 0
        %888 = vmatpush.msra.mxu0 0.0
        %889 = vmatpush.msra.mxu0 0.0
        %890 = vmatpush.msra.mxu0 0.0
        %891 = vmatpush.msra.mxu0 0.0
        %892 = vmatpush.msra.mxu0 0.0
        %893 = vmatpush.msra.mxu0 0.0
        %894 = vmatpush.msra.mxu0 0.0
        %895 = vmatpush.msra.mxu0 0.0
        %896 = vmatpush.msra.mxu0 0.0
        %897 = vmatpush.msra.mxu0 0.0
        %898 = vmatpush.msra.mxu0 0.0
        %899 = vmatpush.msra.mxu0 0.0
        %900 = vmatpush.msra.mxu0 %v328
        %901 = vmatpush.msra.mxu0 %v327
        %902 = vmatpush.msra.mxu0 %v326
        %903 = vmatpush.msra.mxu0 %v325
        %904 = vmatmul.f32.gmra.mxu0 %v886
        %v905 = vpop.f32.mrf.mxu0
        %v906 = vadd.f32 0.0, %v905
        %907 = vdwg.mxu0
        %v908 = vadd.f32 %v883, %v906
        %v909 = vxor.u32 %v908, 2147483648
        %v910 = vmul.f32 %v909, 1.442695
        %v911 = vpow.pop %v910
        %v912 = vadd.f32 %v911, 1.0
        %v913 = vrcp.pop %v912
        %v914 = vmul.f32 %v912, %v913
        %v915 = vsub.f32 1.0, %v914
        %v916 = vmul.f32 %v913, %v915
        %v917 = vadd.f32 %v913, %v916
        %vm918 = vweird.f32 %v912
        %vm919 = vweird.f32 %v913
        %vm920 = vmor %vm918, %vm919
        %v921 = vsel %vm920, %v913, %v917
        %v922 = vand.u32 2147483647, %v912
        %vm923 = vcmp.eq.f32.partialorder %v922, 8.507059e+37
        %v924 = vand.u32 %v912, 2147483648
        %v925 = vor.u32 1.1754944e-38, %v924
        %v926 = vsel %vm923, %v925, %v921
        %v927 = vmul.f32 1.0, %v926
        %v928 = vtanh.pop %v908
        %v929 = vld [vmem:[#allocation5] sm:$0xff]
        %931 = vrot.lane.b32.xlu0 %v929, 32
        %v932 = vpop.permute.xlu0 %931
        %v934 = vmul.f32 %v927, %v932
        %936 = vrot.lane.b32.xlu0 %v928, 64
        %v937 = vpop.permute.xlu0 %936
        %v939 = vmul.f32 %v927, %v937
        %941 = vrot.lane.b32.xlu0 %v939, 32
        %v942 = vpop.permute.xlu0 %941
        %v944 = vadd.f32 %v934, %v942
        %v945 = vtanh.pop %v944
        %947 = vrot.lane.b32.xlu0 %v945, 64
        %v948 = vpop.permute.xlu0 %947
        %v950 = vmul.f32 %v927, %v948
        %952 = vrot.lane.b32.xlu0 %v944, 96
        %v953 = vpop.permute.xlu0 %952
        %955 = vst.msk [vmem:[#allocation5] sm:$0xff] %vm333, %v953
        %957 = vrot.lane.b32.xlu0 %v950, 32
        %v958 = vpop.permute.xlu0 %957
        %960 = vst.msk [vmem:[#allocation4] sm:$0xff] %vm333, %v958
        %s961 = scalar_lea.vmem [#allocation2], 56
        %v962 = vld [vmem:[%s961] sm:$0xff]
        %v963 = vld [vmem:[#allocation4] sm:$0xff]
        %v965 = vsel %vm333, %v963, 0
        %967 = vmatpush.msra.mxu0 0.0
        %968 = vmatpush.msra.mxu0 0.0
        %969 = vmatpush.msra.mxu0 0.0
        %970 = vmatpush.msra.mxu0 0.0
        %971 = vmatpush.msra.mxu0 0.0
        %972 = vmatpush.msra.mxu0 0.0
        %973 = vmatpush.msra.mxu0 0.0
        %974 = vmatpush.msra.mxu0 0.0
        %975 = vmatpush.msra.mxu0 0.0
        %976 = vmatpush.msra.mxu0 0.0
        %977 = vmatpush.msra.mxu0 0.0
        %978 = vmatpush.msra.mxu0 0.0
        %979 = vmatpush.msra.mxu0 %v328
        %980 = vmatpush.msra.mxu0 %v327
        %981 = vmatpush.msra.mxu0 %v326
        %982 = vmatpush.msra.mxu0 %v325
        %983 = vmatmul.f32.gmra.mxu0 %v965
        %v984 = vpop.f32.mrf.mxu0
        %v985 = vadd.f32 0.0, %v984
        %986 = vdwg.mxu0
        %v987 = vadd.f32 %v962, %v985
        %v988 = vxor.u32 %v987, 2147483648
        %v989 = vmul.f32 %v988, 1.442695
        %v990 = vpow.pop %v989
        %v991 = vadd.f32 %v990, 1.0
        %v992 = vrcp.pop %v991
        %v993 = vmul.f32 %v991, %v992
        %v994 = vsub.f32 1.0, %v993
        %v995 = vmul.f32 %v992, %v994
        %v996 = vadd.f32 %v992, %v995
        %vm997 = vweird.f32 %v991
        %vm998 = vweird.f32 %v992
        %vm999 = vmor %vm997, %vm998
        %v1000 = vsel %vm999, %v992, %v996
        %v1001 = vand.u32 2147483647, %v991
        %vm1002 = vcmp.eq.f32.partialorder %v1001, 8.507059e+37
        %v1003 = vand.u32 %v991, 2147483648
        %v1004 = vor.u32 1.1754944e-38, %v1003
        %v1005 = vsel %vm1002, %v1004, %v1000
        %v1006 = vmul.f32 1.0, %v1005
        %v1007 = vtanh.pop %v987
        %v1008 = vld [vmem:[#allocation5] sm:$0xff]
        %1010 = vrot.lane.b32.xlu0 %v1008, 32
        %v1011 = vpop.permute.xlu0 %1010
        %v1013 = vmul.f32 %v1006, %v1011
        %1015 = vrot.lane.b32.xlu0 %v1007, 64
        %v1016 = vpop.permute.xlu0 %1015
        %v1018 = vmul.f32 %v1006, %v1016
        %1020 = vrot.lane.b32.xlu0 %v1018, 32
        %v1021 = vpop.permute.xlu0 %1020
        %v1023 = vadd.f32 %v1013, %v1021
        %v1024 = vtanh.pop %v1023
        %1026 = vrot.lane.b32.xlu0 %v1024, 64
        %v1027 = vpop.permute.xlu0 %1026
        %v1029 = vmul.f32 %v1006, %v1027
        %1031 = vrot.lane.b32.xlu0 %v1023, 96
        %v1032 = vpop.permute.xlu0 %1031
        %1034 = vst.msk [vmem:[#allocation5] sm:$0xff] %vm333, %v1032
        %1036 = vrot.lane.b32.xlu0 %v1029, 32
        %v1037 = vpop.permute.xlu0 %1036
        %1039 = vst.msk [vmem:[#allocation4] sm:$0xff] %vm333, %v1037
        %v1040 = vld [vmem:[#allocation5] sm:$0xff]
        %1041 = vst.msk [vmem:[%s309] sm:$0xff] %vm333, %v1040
        %s1042 = sand.u32 %s136, 1
        %s1043 = scalar_lea.sflag [#allocation8], %s1042
        %s1044 = sand.u32 %s136, 1
        %s1045 = smul.addr %s1044, 8
        %s1046 = scalar_lea.vmem [#allocation12], %s1045
        // Predicated region
        $region49: #{tpu_custom_call.1} parent=35 // pred_check
          %p1047 = pneg %p146
        $region50: #{tpu_custom_call.1} parent=35 // pred_check_branch
          %1049 = sbr.rel (%p1047) target = $region52
        $region51: #{tpu_custom_call.1} parent=35 // pred_region
          %1051 = vsyncadd %s1043, 0
          %s1052 = smul.addr %s24, 8
          %s1053 = scalar_lea.hbm %s4, %s1052
          %s1055 = sshll.u32 %s1046, 4
          %s1056 = int_to_ptr.vmem [resolvable:$true] %s1055
          %s1057 = sshll.u32 %s1053, 4
          %s1058 = int_to_ptr.hbm [resolvable:$true] %s1057
          %1060 = dma.vmem_to_hbm [thread:$0]  %s1056, 128, %s1058, %s1043
        $region52: #{tpu_custom_call.1} parent=35 // pred_fallthru
          _
      $region36: #{tpu_custom_call.1} parent=5 // pred_fallthru
        _
      %p1061 = scmp.le.s32.totalorder 2, %s19
      // Predicated region
      $region53: #{tpu_custom_call.1} parent=5 // pred_check
        %p1062 = pneg %p1061
      $region54: #{tpu_custom_call.1} parent=5 // pred_check_branch
        %1064 = sbr.rel (%p1062) target = $region56
      $region55: #{tpu_custom_call.1} parent=5 // pred_region
        %s1065 = ssub.s32 %s19, 2
        // Predicated region
        $region57: #{tpu_custom_call.1} parent=55 // pred_check
          %p1066 = pneg %p152
        $region58: #{tpu_custom_call.1} parent=55 // pred_check_branch
          %1068 = sbr.rel (%p1066) target = $region60
        $region59: #{tpu_custom_call.1} parent=55 // pred_region
          %s1069 = sand.u32 %s137, 1
          %s1070 = scalar_lea.sflag [#allocation8], %s1069
          %s1071 = sand.u32 %s137, 1
          %s1072 = smul.addr %s1071, 8
          %s1073 = scalar_lea.vmem [#allocation12], %s1072
          %1075 = dma.done %s1070, 128
        $region60: #{tpu_custom_call.1} parent=55 // pred_fallthru
          _
      $region56: #{tpu_custom_call.1} parent=5 // pred_fallthru
        _
    $region6: #{tpu_custom_call.1} parent=1 // loop_footer
      %s23 = sadd.s32 1, %s19
    $region7: #{tpu_custom_call.1} parent=1 // loop_footer_branch
      %18 = sbr.rel target = $region3
    $region8: #{tpu_custom_call.1} parent=1 // loop_exit
      _
    %1076 = vsyncpa [#allocation7], 1
    %s1077 = scalar_lea.sflag [#allocation7], 1
    %1078 = vsyncpa %s1077, 1
    %1079 = vsyncpa [#allocation10], 1
    %s1080 = scalar_lea.sflag [#allocation10], 1
    %1081 = vsyncpa %s1080, 1
    %1082 = vsyncpa [#allocation8], 1
    %s1083 = scalar_lea.sflag [#allocation8], 1
    %1084 = vsyncpa %s1083, 1

</llo_original>
